<compile_context>
chip_gen: v7x
topology: tpu7x:2x2x1
jax: 0.10.0
libtpu: 0.0.40
codegen_flags: <defaults>
</compile_context>

<pallas_src>
import functools

import jax
import jax.numpy as jnp
from jax.experimental import pallas as pl
from jax.experimental.pallas import tpu as pltpu

IN_DIM = 28 * 28        # 784
IN_PAD = 896            # 7 * 128 — lane-aligned K for layer 1
H1 = 512
H2 = 256
OUT_DIM = 1


def _round_up(n, m):
    return ((n + m - 1) // m) * m


def _leaky_relu(x, slope=0.2):
    return jnp.where(x > 0, x, slope * x)


def disc_kernel(x_ref, w1_ref, b1_ref, w2_ref, b2_ref, w3t_ref, b3_ref, o_ref):
    """Fused 3-layer MLP: bf16 MXU matmuls, f32 activations, VPU final layer."""
    x = x_ref[...]                                                      # (tb, 896) bf16
    # Layer 1: MXU, f32 accumulation; bias + LeakyReLU in f32 (VPU).
    h1 = jnp.dot(x, w1_ref[...], preferred_element_type=jnp.float32)   # (tb, 512) f32
    h1 = _leaky_relu(h1 + b1_ref[...])
    # Layer 2: back to bf16 for the MXU input, accumulate f32.
    h2 = jnp.dot(h1.astype(jnp.bfloat16), w2_ref[...],
                 preferred_element_type=jnp.float32)                    # (tb, 256) f32
    h2 = _leaky_relu(h2 + b2_ref[...])
    # Layer 3 (N=1): VPU multiply + XLU row-reduce instead of a full MXU pass.
    o = jnp.sum(h2 * w3t_ref[...], axis=-1, keepdims=True) + b3_ref[...]  # (tb, 1)
    o_ref[...] = o.astype(o_ref.dtype)


@functools.partial(jax.jit, static_argnames=("tb",))
def discriminator_forward(x, params, *, tb=256):
    """x: (B, 784) float32. params: transposed (in, out) weights + row biases."""
    B = x.shape[0]

    # Pick the batch tile. Large batches: fixed tb (256 keeps 128/256-row MXU
    # occupancy). Medium batches: split in two so a 2-TC chip (v7x) gets >= 2
    # parallel grid steps. Small batches: one 8-aligned tile.
    if B > tb:
        tb_eff = tb
        B_pad = _round_up(B, tb_eff)
    elif B >= 256:
        tb_eff = _round_up((B + 1) // 2, 128)
        B_pad = _round_up(B, tb_eff)
    else:
        tb_eff = _round_up(max(B, 1), 8)
        B_pad = tb_eff

    w1, b1, w2, b2, w3, b3 = (
        params["w1"], params["b1"], params["w2"],
        params["b2"], params["w3"], params["b3"],
    )

    # Wrapper-side layout prep: zero-pad batch and feature dims, cast matmul
    # operands to bf16. Zero-padded rows stay finite (bias -> LeakyReLU) and
    # are sliced off after the call.
    x_p = jnp.pad(x, ((0, B_pad - B), (0, IN_PAD - IN_DIM))).astype(jnp.bfloat16)
    w1_p = jnp.pad(w1, ((0, IN_PAD - IN_DIM), (0, 0))).astype(jnp.bfloat16)
    w2_b = w2.astype(jnp.bfloat16)
    w3t = w3.T.astype(jnp.float32)          # (1, 256) — stays on the VPU in f32
    b1_f = b1.astype(jnp.float32)
    b2_f = b2.astype(jnp.float32)
    b3_f = b3.astype(jnp.float32)

    grid = (B_pad // tb_eff,)
    rep = lambda i: (0, 0)                  # weights/biases resident across the grid

    out = pl.pallas_call(
        disc_kernel,
        out_shape=jax.ShapeDtypeStruct((B_pad, OUT_DIM), jnp.float32),
        grid_spec=pltpu.PrefetchScalarGridSpec(
            num_scalar_prefetch=0,
            grid=grid,
            in_specs=[
                pl.BlockSpec((tb_eff, IN_PAD), lambda i: (i, 0)),   # x tile
                pl.BlockSpec((IN_PAD, H1), rep),                    # w1 (bf16, K padded)
                pl.BlockSpec((1, H1), rep),                         # b1 (f32)
                pl.BlockSpec((H1, H2), rep),                        # w2 (bf16)
                pl.BlockSpec((1, H2), rep),                         # b2 (f32)
                pl.BlockSpec((1, H2), rep),                         # w3^T (f32)
                pl.BlockSpec((1, OUT_DIM), rep),                    # b3 (f32)
            ],
            out_specs=pl.BlockSpec((tb_eff, OUT_DIM), lambda i: (i, 0)),
        ),
        compiler_params=pltpu.CompilerParams(
            dimension_semantics=("parallel",),
        ),
    )(x_p, w1_p, b1_f, w2_b, b2_f, w3t, b3_f)

    return out[:B].astype(x.dtype)


def init_params(key):
    """nn.Linear default init: U(-1/sqrt(fan_in), +1/sqrt(fan_in)).

    Weights stored transposed (in, out) for the kernel's x @ W layout.
    """
    ks = jax.random.split(key, 6)

    def linear(kw, kb, fan_in, fan_out):
        bound = 1.0 / jnp.sqrt(fan_in)
        w = jax.random.uniform(kw, (fan_in, fan_out), jnp.float32, -bound, bound)
        b = jax.random.uniform(kb, (1, fan_out), jnp.float32, -bound, bound)
        return w, b

    w1, b1 = linear(ks[0], ks[1], IN_DIM, H1)
    w2, b2 = linear(ks[2], ks[3], H1, H2)
    w3, b3 = linear(ks[4], ks[5], H2, OUT_DIM)
    return {"w1": w1, "b1": b1, "w2": w2, "b2": b2, "w3": w3, "b3": b3}


def reference_forward(x, p):
    h1 = _leaky_relu(x @ p["w1"] + p["b1"])
    h2 = _leaky_relu(h1 @ p["w2"] + p["b2"])
    return h2 @ p["w3"] + p["b3"]


if __name__ == "__main__":
    key = jax.random.PRNGKey(0)
    k_param, k_x = jax.random.split(key)

    params = init_params(k_param)
    B = 8
    x = jax.random.normal(k_x, (B, IN_DIM), jnp.float32)  # flattened 28x28 images

    out = discriminator_forward(x, params)
    out = jax.block_until_ready(out)

    ref = reference_forward(x, params)
    assert out.shape == (B, 1), out.shape
    # bf16 matmul inputs (f32 accumulation) -> loosened tolerance vs f32 reference.
    assert jnp.allclose(out, ref, atol=5e-2, rtol=5e-2), "mismatch vs reference"

    print("KERNEL_OK")
</pallas_src>

<mosaic_0001>
module attributes {stable_mosaic.version = 11 : i64} {
  func.func @disc_kernel(%arg0: i32, %arg1: memref<8x896xbf16, #tpu.memory_space<vmem>>, %arg2: memref<896x512xbf16, #tpu.memory_space<vmem>>, %arg3: memref<1x512xf32, #tpu.memory_space<vmem>>, %arg4: memref<512x256xbf16, #tpu.memory_space<vmem>>, %arg5: memref<1x256xf32, #tpu.memory_space<vmem>>, %arg6: memref<1x256xf32, #tpu.memory_space<vmem>>, %arg7: memref<1x1xf32, #tpu.memory_space<vmem>>, %arg8: memref<8x1xf32, #tpu.memory_space<vmem>>) attributes {dimension_semantics = [#tpu.dimension_semantics<parallel>], iteration_bounds = array<i64: 1>, scalar_prefetch = 0 : i64, scratch_operands = 0 : i64, tpu.core_type = #tpu.core_type<tc>, window_params = [{transform_indices = @transform_0, window_bounds = array<i64: 8, 896>}, {pipeline_mode = #tpu.pipeline_mode<synchronous>, transform_indices = @transform_1, window_bounds = array<i64: 896, 512>}, {pipeline_mode = #tpu.pipeline_mode<synchronous>, transform_indices = @transform_2, window_bounds = array<i64: 1, 512>}, {pipeline_mode = #tpu.pipeline_mode<synchronous>, transform_indices = @transform_3, window_bounds = array<i64: 512, 256>}, {pipeline_mode = #tpu.pipeline_mode<synchronous>, transform_indices = @transform_4, window_bounds = array<i64: 1, 256>}, {pipeline_mode = #tpu.pipeline_mode<synchronous>, transform_indices = @transform_5, window_bounds = array<i64: 1, 256>}, {pipeline_mode = #tpu.pipeline_mode<synchronous>, transform_indices = @transform_6, window_bounds = array<i64: 1, 1>}, {transform_indices = @transform_7, window_bounds = array<i64: 8, 1>}]} {
    %c0 = arith.constant 0 : index
    %c0_0 = arith.constant 0 : index
    %0 = vector.load %arg1[%c0, %c0_0] : memref<8x896xbf16, #tpu.memory_space<vmem>>, vector<8x896xbf16>
    %c0_1 = arith.constant 0 : index
    %c0_2 = arith.constant 0 : index
    %1 = vector.load %arg2[%c0_1, %c0_2] : memref<896x512xbf16, #tpu.memory_space<vmem>>, vector<896x512xbf16>
    %cst = arith.constant dense<0.000000e+00> : vector<8x512xf32>
    %2 = tpu.matmul %0, %1, %cst {dimension_numbers = #tpu.dot_dimension_numbers<[1], [0], [0], [1], [0, 0, 1, 1], [], []>} : vector<8x896xbf16>, vector<896x512xbf16>, vector<8x512xf32> -> vector<8x512xf32>
    %c0_3 = arith.constant 0 : index
    %c0_4 = arith.constant 0 : index
    %3 = vector.load %arg3[%c0_3, %c0_4] : memref<1x512xf32, #tpu.memory_space<vmem>>, vector<1x512xf32>
    %4 = vector.broadcast %3 : vector<1x512xf32> to vector<8x512xf32>
    %5 = arith.addf %2, %4 : vector<8x512xf32>
    %cst_5 = arith.constant 0.000000e+00 : f32
    %6 = vector.broadcast %cst_5 : f32 to vector<8x512xf32>
    %7 = arith.cmpf ogt, %5, %6 : vector<8x512xf32>
    %cst_6 = arith.constant 2.000000e-01 : f32
    %8 = vector.broadcast %cst_6 : f32 to vector<8x512xf32>
    %9 = arith.mulf %8, %5 : vector<8x512xf32>
    %10 = arith.select %7, %5, %9 : vector<8x512xi1>, vector<8x512xf32>
    %11 = arith.truncf %10 : vector<8x512xf32> to vector<8x512xbf16>
    %c0_7 = arith.constant 0 : index
    %c0_8 = arith.constant 0 : index
    %12 = vector.load %arg4[%c0_7, %c0_8] : memref<512x256xbf16, #tpu.memory_space<vmem>>, vector<512x256xbf16>
    %cst_9 = arith.constant dense<0.000000e+00> : vector<8x256xf32>
    %13 = tpu.matmul %11, %12, %cst_9 {dimension_numbers = #tpu.dot_dimension_numbers<[1], [0], [0], [1], [0, 0, 1, 1], [], []>} : vector<8x512xbf16>, vector<512x256xbf16>, vector<8x256xf32> -> vector<8x256xf32>
    %c0_10 = arith.constant 0 : index
    %c0_11 = arith.constant 0 : index
    %14 = vector.load %arg5[%c0_10, %c0_11] : memref<1x256xf32, #tpu.memory_space<vmem>>, vector<1x256xf32>
    %15 = vector.broadcast %14 : vector<1x256xf32> to vector<8x256xf32>
    %16 = arith.addf %13, %15 : vector<8x256xf32>
    %cst_12 = arith.constant 0.000000e+00 : f32
    %17 = vector.broadcast %cst_12 : f32 to vector<8x256xf32>
    %18 = arith.cmpf ogt, %16, %17 : vector<8x256xf32>
    %cst_13 = arith.constant 2.000000e-01 : f32
    %19 = vector.broadcast %cst_13 : f32 to vector<8x256xf32>
    %20 = arith.mulf %19, %16 : vector<8x256xf32>
    %21 = arith.select %18, %16, %20 : vector<8x256xi1>, vector<8x256xf32>
    %c0_14 = arith.constant 0 : index
    %c0_15 = arith.constant 0 : index
    %22 = vector.load %arg6[%c0_14, %c0_15] : memref<1x256xf32, #tpu.memory_space<vmem>>, vector<1x256xf32>
    %23 = vector.broadcast %22 : vector<1x256xf32> to vector<8x256xf32>
    %24 = arith.mulf %21, %23 : vector<8x256xf32>
    %cst_16 = arith.constant dense<0.000000e+00> : vector<8xf32>
    %25 = vector.multi_reduction <add>, %24, %cst_16 [1] : vector<8x256xf32> to vector<8xf32>
    %26 = vector.shape_cast %25 : vector<8xf32> to vector<8x1xf32>
    %c0_17 = arith.constant 0 : index
    %c0_18 = arith.constant 0 : index
    %27 = vector.load %arg7[%c0_17, %c0_18] : memref<1x1xf32, #tpu.memory_space<vmem>>, vector<1x1xf32>
    %28 = vector.broadcast %27 : vector<1x1xf32> to vector<8x1xf32>
    %29 = arith.addf %26, %28 : vector<8x1xf32>
    %c0_19 = arith.constant 0 : index
    %c0_20 = arith.constant 0 : index
    %30 = vector.load %arg8[%c0_19, %c0_20] : memref<8x1xf32, #tpu.memory_space<vmem>>, vector<8x1xf32>
    tpu.vector_store %arg8[%c0_19, %c0_20], %29 {strides = array<i32>} : memref<8x1xf32, #tpu.memory_space<vmem>>, vector<8x1xf32>,
    return
  }
  func.func @transform_0(%arg0: i32) -> (i32, i32) {
    %c0_i32 = arith.constant 0 : i32
    %c0_i32_0 = arith.constant 0 : i32
    return %arg0, %c0_i32 : i32, i32
  }
  func.func @transform_1(%arg0: i32) -> (i32, i32) {
    %c0_i32 = arith.constant 0 : i32
    %c0_i32_0 = arith.constant 0 : i32
    %c0_i32_1 = arith.constant 0 : i32
    return %c0_i32, %c0_i32_0 : i32, i32
  }
  func.func @transform_2(%arg0: i32) -> (i32, i32) {
    %c0_i32 = arith.constant 0 : i32
    %c0_i32_0 = arith.constant 0 : i32
    %c0_i32_1 = arith.constant 0 : i32
    return %c0_i32, %c0_i32_0 : i32, i32
  }
  func.func @transform_3(%arg0: i32) -> (i32, i32) {
    %c0_i32 = arith.constant 0 : i32
    %c0_i32_0 = arith.constant 0 : i32
    %c0_i32_1 = arith.constant 0 : i32
    return %c0_i32, %c0_i32_0 : i32, i32
  }
  func.func @transform_4(%arg0: i32) -> (i32, i32) {
    %c0_i32 = arith.constant 0 : i32
    %c0_i32_0 = arith.constant 0 : i32
    %c0_i32_1 = arith.constant 0 : i32
    return %c0_i32, %c0_i32_0 : i32, i32
  }
  func.func @transform_5(%arg0: i32) -> (i32, i32) {
    %c0_i32 = arith.constant 0 : i32
    %c0_i32_0 = arith.constant 0 : i32
    %c0_i32_1 = arith.constant 0 : i32
    return %c0_i32, %c0_i32_0 : i32, i32
  }
  func.func @transform_6(%arg0: i32) -> (i32, i32) {
    %c0_i32 = arith.constant 0 : i32
    %c0_i32_0 = arith.constant 0 : i32
    %c0_i32_1 = arith.constant 0 : i32
    return %c0_i32, %c0_i32_0 : i32, i32
  }
  func.func @transform_7(%arg0: i32) -> (i32, i32) {
    %c0_i32 = arith.constant 0 : i32
    %c0_i32_0 = arith.constant 0 : i32
    return %arg0, %c0_i32 : i32, i32
  }
}

</mosaic_0001>

<llo_original>
// kernel: discriminator_forward.1
$region0: #{discriminator_forward.1}
  #allocation0 [shape = 'u32[]', space=smem, size = 0x4, offset = 0x4, fixed_abs, tag = 'smem constant byte address 0x4 - core index']
  #allocation1 [shape = 'u32[144,128]{1,0:T(1,128)}', space=vmem, size = 0x12000, scoped, tag = 'internal scratch']
  #allocation2 [shape = 'f32[1,1]{1,0:T(1,128)S(1)}', space=vmem, size = 0x200, scoped, tag = 'scoped memory for discriminator_forward.1']
  %s0 = inlined_call_operand.vmem [shape: bf16[8,896], index: 0, kind: input, shape index: {}]
  %s1 = inlined_call_operand.vmem [shape: bf16[896,512], index: 1, kind: input, shape index: {}]
  %s2 = inlined_call_operand.vmem [shape: f32[1,512], index: 2, kind: input, shape index: {}]
  %s3 = inlined_call_operand.vmem [shape: bf16[512,256], index: 3, kind: input, shape index: {}]
  %s4 = inlined_call_operand.vmem [shape: f32[1,256], index: 4, kind: input, shape index: {}]
  %s5 = inlined_call_operand.vmem [shape: f32[1,256], index: 5, kind: input, shape index: {}]
  %s6 = inlined_call_operand.<no memory space> [shape: f32[1,1], index: 6, kind: input, shape index: {}]
  %s7 = inlined_call_operand.vmem [shape: f32[8,1], index: 7, kind: output, shape index: {}]
  %s8 = sld [smem:[#allocation0]]
  $region38: #{discriminator_forward.1} parent=0
    _
  %s10 = ssub.s32 1, %s8
  %s11 = scalar_select 0, %s10, %s8
  %v12 = vstv %s6
  %13 = vst [vmem:[#allocation2] sm:$0x1] %v12
  // Predicated region
  $region2: #{discriminator_forward.1} parent=0 // pred_check
    _
  $region3: #{discriminator_forward.1} parent=0 // pred_check_branch
    %15 = sbr.rel (0) target = $region5
  $region4: #{discriminator_forward.1} parent=0 // pred_region
    _
  $region5: #{discriminator_forward.1} parent=0 // pred_fallthru
    _
  // Predicated region
  $region6: #{discriminator_forward.1} parent=0 // pred_check
    _
  $region7: #{discriminator_forward.1} parent=0 // pred_check_branch
    %17 = sbr.rel (0) target = $region9
  $region8: #{discriminator_forward.1} parent=0 // pred_region
    _
  $region9: #{discriminator_forward.1} parent=0 // pred_fallthru
    _
  // Predicated region
  $region10: #{discriminator_forward.1} parent=0 // pred_check
    _
  $region11: #{discriminator_forward.1} parent=0 // pred_check_branch
    %19 = sbr.rel (0) target = $region13
  $region12: #{discriminator_forward.1} parent=0 // pred_region
    _
  $region13: #{discriminator_forward.1} parent=0 // pred_fallthru
    _
  // Predicated region
  $region14: #{discriminator_forward.1} parent=0 // pred_check
    _
  $region15: #{discriminator_forward.1} parent=0 // pred_check_branch
    %21 = sbr.rel (0) target = $region17
  $region16: #{discriminator_forward.1} parent=0 // pred_region
    _
  $region17: #{discriminator_forward.1} parent=0 // pred_fallthru
    _
  // Predicated region
  $region18: #{discriminator_forward.1} parent=0 // pred_check
    _
  $region19: #{discriminator_forward.1} parent=0 // pred_check_branch
    %23 = sbr.rel (0) target = $region21
  $region20: #{discriminator_forward.1} parent=0 // pred_region
    _
  $region21: #{discriminator_forward.1} parent=0 // pred_fallthru
    _
  // Predicated region
  $region22: #{discriminator_forward.1} parent=0 // pred_check
    _
  $region23: #{discriminator_forward.1} parent=0 // pred_check_branch
    %25 = sbr.rel (0) target = $region25
  $region24: #{discriminator_forward.1} parent=0 // pred_region
    _
  $region25: #{discriminator_forward.1} parent=0 // pred_fallthru
    _
  // Predicated region
  $region26: #{discriminator_forward.1} parent=0 // pred_check
    _
  $region27: #{discriminator_forward.1} parent=0 // pred_check_branch
    %27 = sbr.rel (0) target = $region29
  $region28: #{discriminator_forward.1} parent=0 // pred_region
    _
  $region29: #{discriminator_forward.1} parent=0 // pred_fallthru
    _
  %v29 = vld [vmem:[%s0] sm:$0xff]
  %v30 = vld [vmem:[%s0 + $0x8] sm:$0xff]
  %v31 = vld [vmem:[%s0 + $0x10] sm:$0xff]
  %v32 = vld [vmem:[%s0 + $0x18] sm:$0xf]
  %v33 = vld [vmem:[%s1] sm:$0xff]
  %v34 = vld [vmem:[%s1 + $0x8] sm:$0xff]
  %v35 = vld [vmem:[%s1 + $0x10] sm:$0xff]
  %v36 = vld [vmem:[%s1 + $0x18] sm:$0xff]
  %v37 = vld [vmem:[%s1 + $0x20] sm:$0xff]
  %v38 = vld [vmem:[%s1 + $0x28] sm:$0xff]
  %v39 = vld [vmem:[%s1 + $0x30] sm:$0xff]
  %v40 = vld [vmem:[%s1 + $0x38] sm:$0xff]
  %v41 = vld [vmem:[%s1 + $0x40] sm:$0xff]
  %v42 = vld [vmem:[%s1 + $0x48] sm:$0xff]
  %v43 = vld [vmem:[%s1 + $0x50] sm:$0xff]
  %v44 = vld [vmem:[%s1 + $0x58] sm:$0xff]
  %v45 = vld [vmem:[%s1 + $0x60] sm:$0xff]
  %v46 = vld [vmem:[%s1 + $0x68] sm:$0xff]
  %v47 = vld [vmem:[%s1 + $0x70] sm:$0xff]
  %v48 = vld [vmem:[%s1 + $0x78] sm:$0xff]
  %v49 = vld [vmem:[%s1 + $0x80] sm:$0xff]
  %v50 = vld [vmem:[%s1 + $0x88] sm:$0xff]
  %v51 = vld [vmem:[%s1 + $0x90] sm:$0xff]
  %v52 = vld [vmem:[%s1 + $0x98] sm:$0xff]
  %v53 = vld [vmem:[%s1 + $0xa0] sm:$0xff]
  %v54 = vld [vmem:[%s1 + $0xa8] sm:$0xff]
  %v55 = vld [vmem:[%s1 + $0xb0] sm:$0xff]
  %v56 = vld [vmem:[%s1 + $0xb8] sm:$0xff]
  %v57 = vld [vmem:[%s1 + $0xc0] sm:$0xff]
  %v58 = vld [vmem:[%s1 + $0xc8] sm:$0xff]
  %v59 = vld [vmem:[%s1 + $0xd0] sm:$0xff]
  %v60 = vld [vmem:[%s1 + $0xd8] sm:$0xff]
  %v61 = vld [vmem:[%s1 + $0xe0] sm:$0xff]
  %v62 = vld [vmem:[%s1 + $0xe8] sm:$0xff]
  %v63 = vld [vmem:[%s1 + $0xf0] sm:$0xff]
  %v64 = vld [vmem:[%s1 + $0xf8] sm:$0xff]
  %v65 = vld [vmem:[%s1 + $0x100] sm:$0xff]
  %v66 = vld [vmem:[%s1 + $0x108] sm:$0xff]
  %v67 = vld [vmem:[%s1 + $0x110] sm:$0xff]
  %v68 = vld [vmem:[%s1 + $0x118] sm:$0xff]
  %v69 = vld [vmem:[%s1 + $0x120] sm:$0xff]
  %v70 = vld [vmem:[%s1 + $0x128] sm:$0xff]
  %v71 = vld [vmem:[%s1 + $0x130] sm:$0xff]
  %v72 = vld [vmem:[%s1 + $0x138] sm:$0xff]
  %v73 = vld [vmem:[%s1 + $0x140] sm:$0xff]
  %v74 = vld [vmem:[%s1 + $0x148] sm:$0xff]
  %v75 = vld [vmem:[%s1 + $0x150] sm:$0xff]
  %v76 = vld [vmem:[%s1 + $0x158] sm:$0xff]
  %v77 = vld [vmem:[%s1 + $0x160] sm:$0xff]
  %v78 = vld [vmem:[%s1 + $0x168] sm:$0xff]
  %v79 = vld [vmem:[%s1 + $0x170] sm:$0xff]
  %v80 = vld [vmem:[%s1 + $0x178] sm:$0xff]
  %v81 = vld [vmem:[%s1 + $0x180] sm:$0xff]
  %v82 = vld [vmem:[%s1 + $0x188] sm:$0xff]
  %v83 = vld [vmem:[%s1 + $0x190] sm:$0xff]
  %v84 = vld [vmem:[%s1 + $0x198] sm:$0xff]
  %v85 = vld [vmem:[%s1 + $0x1a0] sm:$0xff]
  %v86 = vld [vmem:[%s1 + $0x1a8] sm:$0xff]
  %v87 = vld [vmem:[%s1 + $0x1b0] sm:$0xff]
  %v88 = vld [vmem:[%s1 + $0x1b8] sm:$0xff]
  %v89 = vld [vmem:[%s1 + $0x1c0] sm:$0xff]
  %v90 = vld [vmem:[%s1 + $0x1c8] sm:$0xff]
  %v91 = vld [vmem:[%s1 + $0x1d0] sm:$0xff]
  %v92 = vld [vmem:[%s1 + $0x1d8] sm:$0xff]
  %v93 = vld [vmem:[%s1 + $0x1e0] sm:$0xff]
  %v94 = vld [vmem:[%s1 + $0x1e8] sm:$0xff]
  %v95 = vld [vmem:[%s1 + $0x1f0] sm:$0xff]
  %v96 = vld [vmem:[%s1 + $0x1f8] sm:$0xff]
  %v97 = vld [vmem:[%s1 + $0x200] sm:$0xff]
  %v98 = vld [vmem:[%s1 + $0x208] sm:$0xff]
  %v99 = vld [vmem:[%s1 + $0x210] sm:$0xff]
  %v100 = vld [vmem:[%s1 + $0x218] sm:$0xff]
  %v101 = vld [vmem:[%s1 + $0x220] sm:$0xff]
  %v102 = vld [vmem:[%s1 + $0x228] sm:$0xff]
  %v103 = vld [vmem:[%s1 + $0x230] sm:$0xff]
  %v104 = vld [vmem:[%s1 + $0x238] sm:$0xff]
  %v105 = vld [vmem:[%s1 + $0x240] sm:$0xff]
  %v106 = vld [vmem:[%s1 + $0x248] sm:$0xff]
  %v107 = vld [vmem:[%s1 + $0x250] sm:$0xff]
  %v108 = vld [vmem:[%s1 + $0x258] sm:$0xff]
  %v109 = vld [vmem:[%s1 + $0x260] sm:$0xff]
  %v110 = vld [vmem:[%s1 + $0x268] sm:$0xff]
  %v111 = vld [vmem:[%s1 + $0x270] sm:$0xff]
  %v112 = vld [vmem:[%s1 + $0x278] sm:$0xff]
  %v113 = vld [vmem:[%s1 + $0x280] sm:$0xff]
  %v114 = vld [vmem:[%s1 + $0x288] sm:$0xff]
  %v115 = vld [vmem:[%s1 + $0x290] sm:$0xff]
  %v116 = vld [vmem:[%s1 + $0x298] sm:$0xff]
  %v117 = vld [vmem:[%s1 + $0x2a0] sm:$0xff]
  %v118 = vld [vmem:[%s1 + $0x2a8] sm:$0xff]
  %v119 = vld [vmem:[%s1 + $0x2b0] sm:$0xff]
  %v120 = vld [vmem:[%s1 + $0x2b8] sm:$0xff]
  %v121 = vld [vmem:[%s1 + $0x2c0] sm:$0xff]
  %v122 = vld [vmem:[%s1 + $0x2c8] sm:$0xff]
  %v123 = vld [vmem:[%s1 + $0x2d0] sm:$0xff]
  %v124 = vld [vmem:[%s1 + $0x2d8] sm:$0xff]
  %v125 = vld [vmem:[%s1 + $0x2e0] sm:$0xff]
  %v126 = vld [vmem:[%s1 + $0x2e8] sm:$0xff]
  %v127 = vld [vmem:[%s1 + $0x2f0] sm:$0xff]
  %v128 = vld [vmem:[%s1 + $0x2f8] sm:$0xff]
  %v129 = vld [vmem:[%s1 + $0x300] sm:$0xff]
  %v130 = vld [vmem:[%s1 + $0x308] sm:$0xff]
  %v131 = vld [vmem:[%s1 + $0x310] sm:$0xff]
  %v132 = vld [vmem:[%s1 + $0x318] sm:$0xff]
  %v133 = vld [vmem:[%s1 + $0x320] sm:$0xff]
  %v134 = vld [vmem:[%s1 + $0x328] sm:$0xff]
  %v135 = vld [vmem:[%s1 + $0x330] sm:$0xff]
  %v136 = vld [vmem:[%s1 + $0x338] sm:$0xff]
  %v137 = vld [vmem:[%s1 + $0x340] sm:$0xff]
  %v138 = vld [vmem:[%s1 + $0x348] sm:$0xff]
  %v139 = vld [vmem:[%s1 + $0x350] sm:$0xff]
  %v140 = vld [vmem:[%s1 + $0x358] sm:$0xff]
  %v141 = vld [vmem:[%s1 + $0x360] sm:$0xff]
  %v142 = vld [vmem:[%s1 + $0x368] sm:$0xff]
  %v143 = vld [vmem:[%s1 + $0x370] sm:$0xff]
  %v144 = vld [vmem:[%s1 + $0x378] sm:$0xff]
  %v145 = vld [vmem:[%s1 + $0x380] sm:$0xff]
  %v146 = vld [vmem:[%s1 + $0x388] sm:$0xff]
  %v147 = vld [vmem:[%s1 + $0x390] sm:$0xff]
  %v148 = vld [vmem:[%s1 + $0x398] sm:$0xff]
  %v149 = vld [vmem:[%s1 + $0x3a0] sm:$0xff]
  %v150 = vld [vmem:[%s1 + $0x3a8] sm:$0xff]
  %v151 = vld [vmem:[%s1 + $0x3b0] sm:$0xff]
  %v152 = vld [vmem:[%s1 + $0x3b8] sm:$0xff]
  %v153 = vld [vmem:[%s1 + $0x3c0] sm:$0xff]
  %v154 = vld [vmem:[%s1 + $0x3c8] sm:$0xff]
  %v155 = vld [vmem:[%s1 + $0x3d0] sm:$0xff]
  %v156 = vld [vmem:[%s1 + $0x3d8] sm:$0xff]
  %v157 = vld [vmem:[%s1 + $0x3e0] sm:$0xff]
  %v158 = vld [vmem:[%s1 + $0x3e8] sm:$0xff]
  %v159 = vld [vmem:[%s1 + $0x3f0] sm:$0xff]
  %v160 = vld [vmem:[%s1 + $0x3f8] sm:$0xff]
  %v161 = vld [vmem:[%s1 + $0x400] sm:$0xff]
  %v162 = vld [vmem:[%s1 + $0x408] sm:$0xff]
  %v163 = vld [vmem:[%s1 + $0x410] sm:$0xff]
  %v164 = vld [vmem:[%s1 + $0x418] sm:$0xff]
  %v165 = vld [vmem:[%s1 + $0x420] sm:$0xff]
  %v166 = vld [vmem:[%s1 + $0x428] sm:$0xff]
  %v167 = vld [vmem:[%s1 + $0x430] sm:$0xff]
  %v168 = vld [vmem:[%s1 + $0x438] sm:$0xff]
  %v169 = vld [vmem:[%s1 + $0x440] sm:$0xff]
  %v170 = vld [vmem:[%s1 + $0x448] sm:$0xff]
  %v171 = vld [vmem:[%s1 + $0x450] sm:$0xff]
  %v172 = vld [vmem:[%s1 + $0x458] sm:$0xff]
  %v173 = vld [vmem:[%s1 + $0x460] sm:$0xff]
  %v174 = vld [vmem:[%s1 + $0x468] sm:$0xff]
  %v175 = vld [vmem:[%s1 + $0x470] sm:$0xff]
  %v176 = vld [vmem:[%s1 + $0x478] sm:$0xff]
  %v177 = vld [vmem:[%s1 + $0x480] sm:$0xff]
  %v178 = vld [vmem:[%s1 + $0x488] sm:$0xff]
  %v179 = vld [vmem:[%s1 + $0x490] sm:$0xff]
  %v180 = vld [vmem:[%s1 + $0x498] sm:$0xff]
  %v181 = vld [vmem:[%s1 + $0x4a0] sm:$0xff]
  %v182 = vld [vmem:[%s1 + $0x4a8] sm:$0xff]
  %v183 = vld [vmem:[%s1 + $0x4b0] sm:$0xff]
  %v184 = vld [vmem:[%s1 + $0x4b8] sm:$0xff]
  %v185 = vld [vmem:[%s1 + $0x4c0] sm:$0xff]
  %v186 = vld [vmem:[%s1 + $0x4c8] sm:$0xff]
  %v187 = vld [vmem:[%s1 + $0x4d0] sm:$0xff]
  %v188 = vld [vmem:[%s1 + $0x4d8] sm:$0xff]
  %v189 = vld [vmem:[%s1 + $0x4e0] sm:$0xff]
  %v190 = vld [vmem:[%s1 + $0x4e8] sm:$0xff]
  %v191 = vld [vmem:[%s1 + $0x4f0] sm:$0xff]
  %v192 = vld [vmem:[%s1 + $0x4f8] sm:$0xff]
  %v193 = vld [vmem:[%s1 + $0x500] sm:$0xff]
  %v194 = vld [vmem:[%s1 + $0x508] sm:$0xff]
  %v195 = vld [vmem:[%s1 + $0x510] sm:$0xff]
  %v196 = vld [vmem:[%s1 + $0x518] sm:$0xff]
  %v197 = vld [vmem:[%s1 + $0x520] sm:$0xff]
  %v198 = vld [vmem:[%s1 + $0x528] sm:$0xff]
  %v199 = vld [vmem:[%s1 + $0x530] sm:$0xff]
  %v200 = vld [vmem:[%s1 + $0x538] sm:$0xff]
  %v201 = vld [vmem:[%s1 + $0x540] sm:$0xff]
  %v202 = vld [vmem:[%s1 + $0x548] sm:$0xff]
  %v203 = vld [vmem:[%s1 + $0x550] sm:$0xff]
  %v204 = vld [vmem:[%s1 + $0x558] sm:$0xff]
  %v205 = vld [vmem:[%s1 + $0x560] sm:$0xff]
  %v206 = vld [vmem:[%s1 + $0x568] sm:$0xff]
  %v207 = vld [vmem:[%s1 + $0x570] sm:$0xff]
  %v208 = vld [vmem:[%s1 + $0x578] sm:$0xff]
  %v209 = vld [vmem:[%s1 + $0x580] sm:$0xff]
  %v210 = vld [vmem:[%s1 + $0x588] sm:$0xff]
  %v211 = vld [vmem:[%s1 + $0x590] sm:$0xff]
  %v212 = vld [vmem:[%s1 + $0x598] sm:$0xff]
  %v213 = vld [vmem:[%s1 + $0x5a0] sm:$0xff]
  %v214 = vld [vmem:[%s1 + $0x5a8] sm:$0xff]
  %v215 = vld [vmem:[%s1 + $0x5b0] sm:$0xff]
  %v216 = vld [vmem:[%s1 + $0x5b8] sm:$0xff]
  %v217 = vld [vmem:[%s1 + $0x5c0] sm:$0xff]
  %v218 = vld [vmem:[%s1 + $0x5c8] sm:$0xff]
  %v219 = vld [vmem:[%s1 + $0x5d0] sm:$0xff]
  %v220 = vld [vmem:[%s1 + $0x5d8] sm:$0xff]
  %v221 = vld [vmem:[%s1 + $0x5e0] sm:$0xff]
  %v222 = vld [vmem:[%s1 + $0x5e8] sm:$0xff]
  %v223 = vld [vmem:[%s1 + $0x5f0] sm:$0xff]
  %v224 = vld [vmem:[%s1 + $0x5f8] sm:$0xff]
  %v225 = vld [vmem:[%s1 + $0x600] sm:$0xff]
  %v226 = vld [vmem:[%s1 + $0x608] sm:$0xff]
  %v227 = vld [vmem:[%s1 + $0x610] sm:$0xff]
  %v228 = vld [vmem:[%s1 + $0x618] sm:$0xff]
  %v229 = vld [vmem:[%s1 + $0x620] sm:$0xff]
  %v230 = vld [vmem:[%s1 + $0x628] sm:$0xff]
  %v231 = vld [vmem:[%s1 + $0x630] sm:$0xff]
  %v232 = vld [vmem:[%s1 + $0x638] sm:$0xff]
  %v233 = vld [vmem:[%s1 + $0x640] sm:$0xff]
  %v234 = vld [vmem:[%s1 + $0x648] sm:$0xff]
  %v235 = vld [vmem:[%s1 + $0x650] sm:$0xff]
  %v236 = vld [vmem:[%s1 + $0x658] sm:$0xff]
  %v237 = vld [vmem:[%s1 + $0x660] sm:$0xff]
  %v238 = vld [vmem:[%s1 + $0x668] sm:$0xff]
  %v239 = vld [vmem:[%s1 + $0x670] sm:$0xff]
  %v240 = vld [vmem:[%s1 + $0x678] sm:$0xff]
  %v241 = vld [vmem:[%s1 + $0x680] sm:$0xff]
  %v242 = vld [vmem:[%s1 + $0x688] sm:$0xff]
  %v243 = vld [vmem:[%s1 + $0x690] sm:$0xff]
  %v244 = vld [vmem:[%s1 + $0x698] sm:$0xff]
  %v245 = vld [vmem:[%s1 + $0x6a0] sm:$0xff]
  %v246 = vld [vmem:[%s1 + $0x6a8] sm:$0xff]
  %v247 = vld [vmem:[%s1 + $0x6b0] sm:$0xff]
  %v248 = vld [vmem:[%s1 + $0x6b8] sm:$0xff]
  %v249 = vld [vmem:[%s1 + $0x6c0] sm:$0xff]
  %v250 = vld [vmem:[%s1 + $0x6c8] sm:$0xff]
  %v251 = vld [vmem:[%s1 + $0x6d0] sm:$0xff]
  %v252 = vld [vmem:[%s1 + $0x6d8] sm:$0xff]
  %v253 = vld [vmem:[%s1 + $0x6e0] sm:$0xff]
  %v254 = vld [vmem:[%s1 + $0x6e8] sm:$0xff]
  %v255 = vld [vmem:[%s1 + $0x6f0] sm:$0xff]
  %v256 = vld [vmem:[%s1 + $0x6f8] sm:$0xff]
  %v257 = vld [vmem:[%s2] sm:$0xf]
  %v259 = vlaneseq
  %v260 = vshrl.u32 %v259, 7
  %v261 = vsub.s32 0, %v260
  %v262 = vrot.slane %v257, %v261
  %v263 = vlaneseq
  %v264 = vshrl.u32 %v263, 7
  %v265 = vsub.s32 1, %v264
  %v266 = vrot.slane %v257, %v265
  %v267 = vlaneseq
  %v268 = vshrl.u32 %v267, 7
  %v269 = vsub.s32 2, %v268
  %v270 = vrot.slane %v257, %v269
  %v271 = vlaneseq
  %v272 = vshrl.u32 %v271, 7
  %v273 = vsub.s32 3, %v272
  %v274 = vrot.slane %v257, %v273
  %v283 = vunpack.c.l.b16 %v29
  %v284 = vunpack.c.h.b16 %v29
  %v285 = vunpack.c.l.b16 %v30
  %v286 = vunpack.c.h.b16 %v30
  %v287 = vunpack.c.l.b16 %v31
  %v288 = vunpack.c.h.b16 %v31
  %v289 = vunpack.c.l.b16 %v32
  %v290 = vpack.c.b16 %v283, %v283
  %v291 = vpack.c.b16 %v284, %v284
  %v292 = vpack.c.b16 %v285, %v285
  %v293 = vpack.c.b16 %v286, %v286
  %v294 = vpack.c.b16 %v287, %v287
  %v295 = vpack.c.b16 %v288, %v288
  %v296 = vpack.c.b16 %v289, %v289
  %v528 = vunpack.c.l.b16 %v33
  %v529 = vunpack.c.h.b16 %v33
  %v530 = vunpack.c.l.b16 %v34
  %v531 = vunpack.c.h.b16 %v34
  %v532 = vunpack.c.l.b16 %v35
  %v533 = vunpack.c.h.b16 %v35
  %v534 = vunpack.c.l.b16 %v36
  %v535 = vunpack.c.h.b16 %v36
  %v536 = vunpack.c.l.b16 %v37
  %v537 = vunpack.c.h.b16 %v37
  %v538 = vunpack.c.l.b16 %v38
  %v539 = vunpack.c.h.b16 %v38
  %v540 = vunpack.c.l.b16 %v39
  %v541 = vunpack.c.h.b16 %v39
  %v542 = vunpack.c.l.b16 %v40
  %v543 = vunpack.c.h.b16 %v40
  %v544 = vunpack.c.l.b16 %v41
  %v545 = vunpack.c.h.b16 %v41
  %v546 = vunpack.c.l.b16 %v42
  %v547 = vunpack.c.h.b16 %v42
  %v548 = vunpack.c.l.b16 %v43
  %v549 = vunpack.c.h.b16 %v43
  %v550 = vunpack.c.l.b16 %v44
  %v551 = vunpack.c.h.b16 %v44
  %v552 = vunpack.c.l.b16 %v45
  %v553 = vunpack.c.h.b16 %v45
  %v554 = vunpack.c.l.b16 %v46
  %v555 = vunpack.c.h.b16 %v46
  %v556 = vunpack.c.l.b16 %v47
  %v557 = vunpack.c.h.b16 %v47
  %v558 = vunpack.c.l.b16 %v48
  %v559 = vunpack.c.h.b16 %v48
  %v560 = vunpack.c.l.b16 %v49
  %v561 = vunpack.c.h.b16 %v49
  %v562 = vunpack.c.l.b16 %v50
  %v563 = vunpack.c.h.b16 %v50
  %v564 = vunpack.c.l.b16 %v51
  %v565 = vunpack.c.h.b16 %v51
  %v566 = vunpack.c.l.b16 %v52
  %v567 = vunpack.c.h.b16 %v52
  %v568 = vunpack.c.l.b16 %v53
  %v569 = vunpack.c.h.b16 %v53
  %v570 = vunpack.c.l.b16 %v54
  %v571 = vunpack.c.h.b16 %v54
  %v572 = vunpack.c.l.b16 %v55
  %v573 = vunpack.c.h.b16 %v55
  %v574 = vunpack.c.l.b16 %v56
  %v575 = vunpack.c.h.b16 %v56
  %v576 = vunpack.c.l.b16 %v57
  %v577 = vunpack.c.h.b16 %v57
  %v578 = vunpack.c.l.b16 %v58
  %v579 = vunpack.c.h.b16 %v58
  %v580 = vunpack.c.l.b16 %v59
  %v581 = vunpack.c.h.b16 %v59
  %v582 = vunpack.c.l.b16 %v60
  %v583 = vunpack.c.h.b16 %v60
  %v584 = vunpack.c.l.b16 %v61
  %v585 = vunpack.c.h.b16 %v61
  %v586 = vunpack.c.l.b16 %v62
  %v587 = vunpack.c.h.b16 %v62
  %v588 = vunpack.c.l.b16 %v63
  %v589 = vunpack.c.h.b16 %v63
  %v590 = vunpack.c.l.b16 %v64
  %v591 = vunpack.c.h.b16 %v64
  %v592 = vunpack.c.l.b16 %v65
  %v593 = vunpack.c.h.b16 %v65
  %v594 = vunpack.c.l.b16 %v66
  %v595 = vunpack.c.h.b16 %v66
  %v596 = vunpack.c.l.b16 %v67
  %v597 = vunpack.c.h.b16 %v67
  %v598 = vunpack.c.l.b16 %v68
  %v599 = vunpack.c.h.b16 %v68
  %v600 = vunpack.c.l.b16 %v69
  %v601 = vunpack.c.h.b16 %v69
  %v602 = vunpack.c.l.b16 %v70
  %v603 = vunpack.c.h.b16 %v70
  %v604 = vunpack.c.l.b16 %v71
  %v605 = vunpack.c.h.b16 %v71
  %v606 = vunpack.c.l.b16 %v72
  %v607 = vunpack.c.h.b16 %v72
  %v608 = vunpack.c.l.b16 %v73
  %v609 = vunpack.c.h.b16 %v73
  %v610 = vunpack.c.l.b16 %v74
  %v611 = vunpack.c.h.b16 %v74
  %v612 = vunpack.c.l.b16 %v75
  %v613 = vunpack.c.h.b16 %v75
  %v614 = vunpack.c.l.b16 %v76
  %v615 = vunpack.c.h.b16 %v76
  %v616 = vunpack.c.l.b16 %v77
  %v617 = vunpack.c.h.b16 %v77
  %v618 = vunpack.c.l.b16 %v78
  %v619 = vunpack.c.h.b16 %v78
  %v620 = vunpack.c.l.b16 %v79
  %v621 = vunpack.c.h.b16 %v79
  %v622 = vunpack.c.l.b16 %v80
  %v623 = vunpack.c.h.b16 %v80
  %v624 = vunpack.c.l.b16 %v81
  %v625 = vunpack.c.h.b16 %v81
  %v626 = vunpack.c.l.b16 %v82
  %v627 = vunpack.c.h.b16 %v82
  %v628 = vunpack.c.l.b16 %v83
  %v629 = vunpack.c.h.b16 %v83
  %v630 = vunpack.c.l.b16 %v84
  %v631 = vunpack.c.h.b16 %v84
  %v632 = vunpack.c.l.b16 %v85
  %v633 = vunpack.c.h.b16 %v85
  %v634 = vunpack.c.l.b16 %v86
  %v635 = vunpack.c.h.b16 %v86
  %v636 = vunpack.c.l.b16 %v87
  %v637 = vunpack.c.h.b16 %v87
  %v638 = vunpack.c.l.b16 %v88
  %v639 = vunpack.c.h.b16 %v88
  %v640 = vunpack.c.l.b16 %v89
  %v641 = vunpack.c.h.b16 %v89
  %v642 = vunpack.c.l.b16 %v90
  %v643 = vunpack.c.h.b16 %v90
  %v644 = vunpack.c.l.b16 %v91
  %v645 = vunpack.c.h.b16 %v91
  %v646 = vunpack.c.l.b16 %v92
  %v647 = vunpack.c.h.b16 %v92
  %v648 = vunpack.c.l.b16 %v93
  %v649 = vunpack.c.h.b16 %v93
  %v650 = vunpack.c.l.b16 %v94
  %v651 = vunpack.c.h.b16 %v94
  %v652 = vunpack.c.l.b16 %v95
  %v653 = vunpack.c.h.b16 %v95
  %v654 = vunpack.c.l.b16 %v96
  %v655 = vunpack.c.h.b16 %v96
  %v656 = vunpack.c.l.b16 %v97
  %v657 = vunpack.c.h.b16 %v97
  %v658 = vunpack.c.l.b16 %v98
  %v659 = vunpack.c.h.b16 %v98
  %v660 = vunpack.c.l.b16 %v99
  %v661 = vunpack.c.h.b16 %v99
  %v662 = vunpack.c.l.b16 %v100
  %v663 = vunpack.c.h.b16 %v100
  %v664 = vunpack.c.l.b16 %v101
  %v665 = vunpack.c.h.b16 %v101
  %v666 = vunpack.c.l.b16 %v102
  %v667 = vunpack.c.h.b16 %v102
  %v668 = vunpack.c.l.b16 %v103
  %v669 = vunpack.c.h.b16 %v103
  %v670 = vunpack.c.l.b16 %v104
  %v671 = vunpack.c.h.b16 %v104
  %v672 = vunpack.c.l.b16 %v105
  %v673 = vunpack.c.h.b16 %v105
  %v674 = vunpack.c.l.b16 %v106
  %v675 = vunpack.c.h.b16 %v106
  %v676 = vunpack.c.l.b16 %v107
  %v677 = vunpack.c.h.b16 %v107
  %v678 = vunpack.c.l.b16 %v108
  %v679 = vunpack.c.h.b16 %v108
  %v680 = vunpack.c.l.b16 %v109
  %v681 = vunpack.c.h.b16 %v109
  %v682 = vunpack.c.l.b16 %v110
  %v683 = vunpack.c.h.b16 %v110
  %v684 = vunpack.c.l.b16 %v111
  %v685 = vunpack.c.h.b16 %v111
  %v686 = vunpack.c.l.b16 %v112
  %v687 = vunpack.c.h.b16 %v112
  %v688 = vunpack.c.l.b16 %v113
  %v689 = vunpack.c.h.b16 %v113
  %v690 = vunpack.c.l.b16 %v114
  %v691 = vunpack.c.h.b16 %v114
  %v692 = vunpack.c.l.b16 %v115
  %v693 = vunpack.c.h.b16 %v115
  %v694 = vunpack.c.l.b16 %v116
  %v695 = vunpack.c.h.b16 %v116
  %v696 = vunpack.c.l.b16 %v117
  %v697 = vunpack.c.h.b16 %v117
  %v698 = vunpack.c.l.b16 %v118
  %v699 = vunpack.c.h.b16 %v118
  %v700 = vunpack.c.l.b16 %v119
  %v701 = vunpack.c.h.b16 %v119
  %v702 = vunpack.c.l.b16 %v120
  %v703 = vunpack.c.h.b16 %v120
  %v704 = vunpack.c.l.b16 %v121
  %v705 = vunpack.c.h.b16 %v121
  %v706 = vunpack.c.l.b16 %v122
  %v707 = vunpack.c.h.b16 %v122
  %v708 = vunpack.c.l.b16 %v123
  %v709 = vunpack.c.h.b16 %v123
  %v710 = vunpack.c.l.b16 %v124
  %v711 = vunpack.c.h.b16 %v124
  %v712 = vunpack.c.l.b16 %v125
  %v713 = vunpack.c.h.b16 %v125
  %v714 = vunpack.c.l.b16 %v126
  %v715 = vunpack.c.h.b16 %v126
  %v716 = vunpack.c.l.b16 %v127
  %v717 = vunpack.c.h.b16 %v127
  %v718 = vunpack.c.l.b16 %v128
  %v719 = vunpack.c.h.b16 %v128
  %v720 = vunpack.c.l.b16 %v129
  %v721 = vunpack.c.h.b16 %v129
  %v722 = vunpack.c.l.b16 %v130
  %v723 = vunpack.c.h.b16 %v130
  %v724 = vunpack.c.l.b16 %v131
  %v725 = vunpack.c.h.b16 %v131
  %v726 = vunpack.c.l.b16 %v132
  %v727 = vunpack.c.h.b16 %v132
  %v728 = vunpack.c.l.b16 %v133
  %v729 = vunpack.c.h.b16 %v133
  %v730 = vunpack.c.l.b16 %v134
  %v731 = vunpack.c.h.b16 %v134
  %v732 = vunpack.c.l.b16 %v135
  %v733 = vunpack.c.h.b16 %v135
  %v734 = vunpack.c.l.b16 %v136
  %v735 = vunpack.c.h.b16 %v136
  %v736 = vunpack.c.l.b16 %v137
  %v737 = vunpack.c.h.b16 %v137
  %v738 = vunpack.c.l.b16 %v138
  %v739 = vunpack.c.h.b16 %v138
  %v740 = vunpack.c.l.b16 %v139
  %v741 = vunpack.c.h.b16 %v139
  %v742 = vunpack.c.l.b16 %v140
  %v743 = vunpack.c.h.b16 %v140
  %v744 = vunpack.c.l.b16 %v141
  %v745 = vunpack.c.h.b16 %v141
  %v746 = vunpack.c.l.b16 %v142
  %v747 = vunpack.c.h.b16 %v142
  %v748 = vunpack.c.l.b16 %v143
  %v749 = vunpack.c.h.b16 %v143
  %v750 = vunpack.c.l.b16 %v144
  %v751 = vunpack.c.h.b16 %v144
  %v752 = vunpack.c.l.b16 %v145
  %v753 = vunpack.c.h.b16 %v145
  %v754 = vunpack.c.l.b16 %v146
  %v755 = vunpack.c.h.b16 %v146
  %v756 = vunpack.c.l.b16 %v147
  %v757 = vunpack.c.h.b16 %v147
  %v758 = vunpack.c.l.b16 %v148
  %v759 = vunpack.c.h.b16 %v148
  %v760 = vunpack.c.l.b16 %v149
  %v761 = vunpack.c.h.b16 %v149
  %v762 = vunpack.c.l.b16 %v150
  %v763 = vunpack.c.h.b16 %v150
  %v764 = vunpack.c.l.b16 %v151
  %v765 = vunpack.c.h.b16 %v151
  %v766 = vunpack.c.l.b16 %v152
  %v767 = vunpack.c.h.b16 %v152
  %v768 = vunpack.c.l.b16 %v153
  %v769 = vunpack.c.h.b16 %v153
  %v770 = vunpack.c.l.b16 %v154
  %v771 = vunpack.c.h.b16 %v154
  %v772 = vunpack.c.l.b16 %v155
  %v773 = vunpack.c.h.b16 %v155
  %v774 = vunpack.c.l.b16 %v156
  %v775 = vunpack.c.h.b16 %v156
  %v776 = vunpack.c.l.b16 %v157
  %v777 = vunpack.c.h.b16 %v157
  %v778 = vunpack.c.l.b16 %v158
  %v779 = vunpack.c.h.b16 %v158
  %v780 = vunpack.c.l.b16 %v159
  %v781 = vunpack.c.h.b16 %v159
  %v782 = vunpack.c.l.b16 %v160
  %v783 = vunpack.c.h.b16 %v160
  %v784 = vunpack.c.l.b16 %v161
  %v785 = vunpack.c.h.b16 %v161
  %v786 = vunpack.c.l.b16 %v162
  %v787 = vunpack.c.h.b16 %v162
  %v788 = vunpack.c.l.b16 %v163
  %v789 = vunpack.c.h.b16 %v163
  %v790 = vunpack.c.l.b16 %v164
  %v791 = vunpack.c.h.b16 %v164
  %v792 = vunpack.c.l.b16 %v165
  %v793 = vunpack.c.h.b16 %v165
  %v794 = vunpack.c.l.b16 %v166
  %v795 = vunpack.c.h.b16 %v166
  %v796 = vunpack.c.l.b16 %v167
  %v797 = vunpack.c.h.b16 %v167
  %v798 = vunpack.c.l.b16 %v168
  %v799 = vunpack.c.h.b16 %v168
  %v800 = vunpack.c.l.b16 %v169
  %v801 = vunpack.c.h.b16 %v169
  %v802 = vunpack.c.l.b16 %v170
  %v803 = vunpack.c.h.b16 %v170
  %v804 = vunpack.c.l.b16 %v171
  %v805 = vunpack.c.h.b16 %v171
  %v806 = vunpack.c.l.b16 %v172
  %v807 = vunpack.c.h.b16 %v172
  %v808 = vunpack.c.l.b16 %v173
  %v809 = vunpack.c.h.b16 %v173
  %v810 = vunpack.c.l.b16 %v174
  %v811 = vunpack.c.h.b16 %v174
  %v812 = vunpack.c.l.b16 %v175
  %v813 = vunpack.c.h.b16 %v175
  %v814 = vunpack.c.l.b16 %v176
  %v815 = vunpack.c.h.b16 %v176
  %v816 = vunpack.c.l.b16 %v177
  %v817 = vunpack.c.h.b16 %v177
  %v818 = vunpack.c.l.b16 %v178
  %v819 = vunpack.c.h.b16 %v178
  %v820 = vunpack.c.l.b16 %v179
  %v821 = vunpack.c.h.b16 %v179
  %v822 = vunpack.c.l.b16 %v180
  %v823 = vunpack.c.h.b16 %v180
  %v824 = vunpack.c.l.b16 %v181
  %v825 = vunpack.c.h.b16 %v181
  %v826 = vunpack.c.l.b16 %v182
  %v827 = vunpack.c.h.b16 %v182
  %v828 = vunpack.c.l.b16 %v183
  %v829 = vunpack.c.h.b16 %v183
  %v830 = vunpack.c.l.b16 %v184
  %v831 = vunpack.c.h.b16 %v184
  %v832 = vunpack.c.l.b16 %v185
  %v833 = vunpack.c.h.b16 %v185
  %v834 = vunpack.c.l.b16 %v186
  %v835 = vunpack.c.h.b16 %v186
  %v836 = vunpack.c.l.b16 %v187
  %v837 = vunpack.c.h.b16 %v187
  %v838 = vunpack.c.l.b16 %v188
  %v839 = vunpack.c.h.b16 %v188
  %v840 = vunpack.c.l.b16 %v189
  %v841 = vunpack.c.h.b16 %v189
  %v842 = vunpack.c.l.b16 %v190
  %v843 = vunpack.c.h.b16 %v190
  %v844 = vunpack.c.l.b16 %v191
  %v845 = vunpack.c.h.b16 %v191
  %v846 = vunpack.c.l.b16 %v192
  %v847 = vunpack.c.h.b16 %v192
  %v848 = vunpack.c.l.b16 %v193
  %v849 = vunpack.c.h.b16 %v193
  %v850 = vunpack.c.l.b16 %v194
  %v851 = vunpack.c.h.b16 %v194
  %v852 = vunpack.c.l.b16 %v195
  %v853 = vunpack.c.h.b16 %v195
  %v854 = vunpack.c.l.b16 %v196
  %v855 = vunpack.c.h.b16 %v196
  %v856 = vunpack.c.l.b16 %v197
  %v857 = vunpack.c.h.b16 %v197
  %v858 = vunpack.c.l.b16 %v198
  %v859 = vunpack.c.h.b16 %v198
  %v860 = vunpack.c.l.b16 %v199
  %v861 = vunpack.c.h.b16 %v199
  %v862 = vunpack.c.l.b16 %v200
  %v863 = vunpack.c.h.b16 %v200
  %v864 = vunpack.c.l.b16 %v201
  %v865 = vunpack.c.h.b16 %v201
  %v866 = vunpack.c.l.b16 %v202
  %v867 = vunpack.c.h.b16 %v202
  %v868 = vunpack.c.l.b16 %v203
  %v869 = vunpack.c.h.b16 %v203
  %v870 = vunpack.c.l.b16 %v204
  %v871 = vunpack.c.h.b16 %v204
  %v872 = vunpack.c.l.b16 %v205
  %v873 = vunpack.c.h.b16 %v205
  %v874 = vunpack.c.l.b16 %v206
  %v875 = vunpack.c.h.b16 %v206
  %v876 = vunpack.c.l.b16 %v207
  %v877 = vunpack.c.h.b16 %v207
  %v878 = vunpack.c.l.b16 %v208
  %v879 = vunpack.c.h.b16 %v208
  %v880 = vunpack.c.l.b16 %v209
  %v881 = vunpack.c.h.b16 %v209
  %v882 = vunpack.c.l.b16 %v210
  %v883 = vunpack.c.h.b16 %v210
  %v884 = vunpack.c.l.b16 %v211
  %v885 = vunpack.c.h.b16 %v211
  %v886 = vunpack.c.l.b16 %v212
  %v887 = vunpack.c.h.b16 %v212
  %v888 = vunpack.c.l.b16 %v213
  %v889 = vunpack.c.h.b16 %v213
  %v890 = vunpack.c.l.b16 %v214
  %v891 = vunpack.c.h.b16 %v214
  %v892 = vunpack.c.l.b16 %v215
  %v893 = vunpack.c.h.b16 %v215
  %v894 = vunpack.c.l.b16 %v216
  %v895 = vunpack.c.h.b16 %v216
  %v896 = vunpack.c.l.b16 %v217
  %v897 = vunpack.c.h.b16 %v217
  %v898 = vunpack.c.l.b16 %v218
  %v899 = vunpack.c.h.b16 %v218
  %v900 = vunpack.c.l.b16 %v219
  %v901 = vunpack.c.h.b16 %v219
  %v902 = vunpack.c.l.b16 %v220
  %v903 = vunpack.c.h.b16 %v220
  %v904 = vunpack.c.l.b16 %v221
  %v905 = vunpack.c.h.b16 %v221
  %v906 = vunpack.c.l.b16 %v222
  %v907 = vunpack.c.h.b16 %v222
  %v908 = vunpack.c.l.b16 %v223
  %v909 = vunpack.c.h.b16 %v223
  %v910 = vunpack.c.l.b16 %v224
  %v911 = vunpack.c.h.b16 %v224
  %v912 = vunpack.c.l.b16 %v225
  %v913 = vunpack.c.h.b16 %v225
  %v914 = vunpack.c.l.b16 %v226
  %v915 = vunpack.c.h.b16 %v226
  %v916 = vunpack.c.l.b16 %v227
  %v917 = vunpack.c.h.b16 %v227
  %v918 = vunpack.c.l.b16 %v228
  %v919 = vunpack.c.h.b16 %v228
  %v920 = vunpack.c.l.b16 %v229
  %v921 = vunpack.c.h.b16 %v229
  %v922 = vunpack.c.l.b16 %v230
  %v923 = vunpack.c.h.b16 %v230
  %v924 = vunpack.c.l.b16 %v231
  %v925 = vunpack.c.h.b16 %v231
  %v926 = vunpack.c.l.b16 %v232
  %v927 = vunpack.c.h.b16 %v232
  %v928 = vunpack.c.l.b16 %v233
  %v929 = vunpack.c.h.b16 %v233
  %v930 = vunpack.c.l.b16 %v234
  %v931 = vunpack.c.h.b16 %v234
  %v932 = vunpack.c.l.b16 %v235
  %v933 = vunpack.c.h.b16 %v235
  %v934 = vunpack.c.l.b16 %v236
  %v935 = vunpack.c.h.b16 %v236
  %v936 = vunpack.c.l.b16 %v237
  %v937 = vunpack.c.h.b16 %v237
  %v938 = vunpack.c.l.b16 %v238
  %v939 = vunpack.c.h.b16 %v238
  %v940 = vunpack.c.l.b16 %v239
  %v941 = vunpack.c.h.b16 %v239
  %v942 = vunpack.c.l.b16 %v240
  %v943 = vunpack.c.h.b16 %v240
  %v944 = vunpack.c.l.b16 %v241
  %v945 = vunpack.c.h.b16 %v241
  %v946 = vunpack.c.l.b16 %v242
  %v947 = vunpack.c.h.b16 %v242
  %v948 = vunpack.c.l.b16 %v243
  %v949 = vunpack.c.h.b16 %v243
  %v950 = vunpack.c.l.b16 %v244
  %v951 = vunpack.c.h.b16 %v244
  %v952 = vunpack.c.l.b16 %v245
  %v953 = vunpack.c.h.b16 %v245
  %v954 = vunpack.c.l.b16 %v246
  %v955 = vunpack.c.h.b16 %v246
  %v956 = vunpack.c.l.b16 %v247
  %v957 = vunpack.c.h.b16 %v247
  %v958 = vunpack.c.l.b16 %v248
  %v959 = vunpack.c.h.b16 %v248
  %v960 = vunpack.c.l.b16 %v249
  %v961 = vunpack.c.h.b16 %v249
  %v962 = vunpack.c.l.b16 %v250
  %v963 = vunpack.c.h.b16 %v250
  %v964 = vunpack.c.l.b16 %v251
  %v965 = vunpack.c.h.b16 %v251
  %v966 = vunpack.c.l.b16 %v252
  %v967 = vunpack.c.h.b16 %v252
  %v968 = vunpack.c.l.b16 %v253
  %v969 = vunpack.c.h.b16 %v253
  %v970 = vunpack.c.l.b16 %v254
  %v971 = vunpack.c.h.b16 %v254
  %v972 = vunpack.c.l.b16 %v255
  %v973 = vunpack.c.h.b16 %v255
  %v974 = vunpack.c.l.b16 %v256
  %v975 = vunpack.c.h.b16 %v256
  %v976 = vpack.c.b16 %v532, %v528
  %v977 = vpack.c.b16 %v533, %v529
  %v978 = vpack.c.b16 %v534, %v530
  %v979 = vpack.c.b16 %v535, %v531
  %v980 = vpack.c.b16 %v540, %v536
  %v981 = vpack.c.b16 %v541, %v537
  %v982 = vpack.c.b16 %v542, %v538
  %v983 = vpack.c.b16 %v543, %v539
  %v984 = vpack.c.b16 %v548, %v544
  %v985 = vpack.c.b16 %v549, %v545
  %v986 = vpack.c.b16 %v550, %v546
  %v987 = vpack.c.b16 %v551, %v547
  %v988 = vpack.c.b16 %v556, %v552
  %v989 = vpack.c.b16 %v557, %v553
  %v990 = vpack.c.b16 %v558, %v554
  %v991 = vpack.c.b16 %v559, %v555
  %v992 = vpack.c.b16 %v564, %v560
  %v993 = vpack.c.b16 %v565, %v561
  %v994 = vpack.c.b16 %v566, %v562
  %v995 = vpack.c.b16 %v567, %v563
  %v996 = vpack.c.b16 %v572, %v568
  %v997 = vpack.c.b16 %v573, %v569
  %v998 = vpack.c.b16 %v574, %v570
  %v999 = vpack.c.b16 %v575, %v571
  %v1000 = vpack.c.b16 %v580, %v576
  %v1001 = vpack.c.b16 %v581, %v577
  %v1002 = vpack.c.b16 %v582, %v578
  %v1003 = vpack.c.b16 %v583, %v579
  %v1004 = vpack.c.b16 %v588, %v584
  %v1005 = vpack.c.b16 %v589, %v585
  %v1006 = vpack.c.b16 %v590, %v586
  %v1007 = vpack.c.b16 %v591, %v587
  %v1008 = vpack.c.b16 %v596, %v592
  %v1009 = vpack.c.b16 %v597, %v593
  %v1010 = vpack.c.b16 %v598, %v594
  %v1011 = vpack.c.b16 %v599, %v595
  %v1012 = vpack.c.b16 %v604, %v600
  %v1013 = vpack.c.b16 %v605, %v601
  %v1014 = vpack.c.b16 %v606, %v602
  %v1015 = vpack.c.b16 %v607, %v603
  %v1016 = vpack.c.b16 %v612, %v608
  %v1017 = vpack.c.b16 %v613, %v609
  %v1018 = vpack.c.b16 %v614, %v610
  %v1019 = vpack.c.b16 %v615, %v611
  %v1020 = vpack.c.b16 %v620, %v616
  %v1021 = vpack.c.b16 %v621, %v617
  %v1022 = vpack.c.b16 %v622, %v618
  %v1023 = vpack.c.b16 %v623, %v619
  %v1024 = vpack.c.b16 %v628, %v624
  %v1025 = vpack.c.b16 %v629, %v625
  %v1026 = vpack.c.b16 %v630, %v626
  %v1027 = vpack.c.b16 %v631, %v627
  %v1028 = vpack.c.b16 %v636, %v632
  %v1029 = vpack.c.b16 %v637, %v633
  %v1030 = vpack.c.b16 %v638, %v634
  %v1031 = vpack.c.b16 %v639, %v635
  %v1032 = vpack.c.b16 %v644, %v640
  %v1033 = vpack.c.b16 %v645, %v641
  %v1034 = vpack.c.b16 %v646, %v642
  %v1035 = vpack.c.b16 %v647, %v643
  %v1036 = vpack.c.b16 %v652, %v648
  %v1037 = vpack.c.b16 %v653, %v649
  %v1038 = vpack.c.b16 %v654, %v650
  %v1039 = vpack.c.b16 %v655, %v651
  %v1040 = vpack.c.b16 %v660, %v656
  %v1041 = vpack.c.b16 %v661, %v657
  %v1042 = vpack.c.b16 %v662, %v658
  %v1043 = vpack.c.b16 %v663, %v659
  %v1044 = vpack.c.b16 %v668, %v664
  %v1045 = vpack.c.b16 %v669, %v665
  %v1046 = vpack.c.b16 %v670, %v666
  %v1047 = vpack.c.b16 %v671, %v667
  %v1048 = vpack.c.b16 %v676, %v672
  %v1049 = vpack.c.b16 %v677, %v673
  %v1050 = vpack.c.b16 %v678, %v674
  %v1051 = vpack.c.b16 %v679, %v675
  %v1052 = vpack.c.b16 %v684, %v680
  %v1053 = vpack.c.b16 %v685, %v681
  %v1054 = vpack.c.b16 %v686, %v682
  %v1055 = vpack.c.b16 %v687, %v683
  %v1056 = vpack.c.b16 %v692, %v688
  %v1057 = vpack.c.b16 %v693, %v689
  %v1058 = vpack.c.b16 %v694, %v690
  %v1059 = vpack.c.b16 %v695, %v691
  %v1060 = vpack.c.b16 %v700, %v696
  %v1061 = vpack.c.b16 %v701, %v697
  %v1062 = vpack.c.b16 %v702, %v698
  %v1063 = vpack.c.b16 %v703, %v699
  %v1064 = vpack.c.b16 %v708, %v704
  %v1065 = vpack.c.b16 %v709, %v705
  %v1066 = vpack.c.b16 %v710, %v706
  %v1067 = vpack.c.b16 %v711, %v707
  %v1068 = vpack.c.b16 %v716, %v712
  %v1069 = vpack.c.b16 %v717, %v713
  %v1070 = vpack.c.b16 %v718, %v714
  %v1071 = vpack.c.b16 %v719, %v715
  %v1072 = vpack.c.b16 %v724, %v720
  %v1073 = vpack.c.b16 %v725, %v721
  %v1074 = vpack.c.b16 %v726, %v722
  %v1075 = vpack.c.b16 %v727, %v723
  %v1076 = vpack.c.b16 %v732, %v728
  %v1077 = vpack.c.b16 %v733, %v729
  %v1078 = vpack.c.b16 %v734, %v730
  %v1079 = vpack.c.b16 %v735, %v731
  %v1080 = vpack.c.b16 %v740, %v736
  %v1081 = vpack.c.b16 %v741, %v737
  %v1082 = vpack.c.b16 %v742, %v738
  %v1083 = vpack.c.b16 %v743, %v739
  %v1084 = vpack.c.b16 %v748, %v744
  %v1085 = vpack.c.b16 %v749, %v745
  %v1086 = vpack.c.b16 %v750, %v746
  %v1087 = vpack.c.b16 %v751, %v747
  %v1088 = vpack.c.b16 %v756, %v752
  %v1089 = vpack.c.b16 %v757, %v753
  %v1090 = vpack.c.b16 %v758, %v754
  %v1091 = vpack.c.b16 %v759, %v755
  %v1092 = vpack.c.b16 %v764, %v760
  %v1093 = vpack.c.b16 %v765, %v761
  %v1094 = vpack.c.b16 %v766, %v762
  %v1095 = vpack.c.b16 %v767, %v763
  %v1096 = vpack.c.b16 %v772, %v768
  %v1097 = vpack.c.b16 %v773, %v769
  %v1098 = vpack.c.b16 %v774, %v770
  %v1099 = vpack.c.b16 %v775, %v771
  %v1100 = vpack.c.b16 %v780, %v776
  %v1101 = vpack.c.b16 %v781, %v777
  %v1102 = vpack.c.b16 %v782, %v778
  %v1103 = vpack.c.b16 %v783, %v779
  %v1104 = vpack.c.b16 %v788, %v784
  %v1105 = vpack.c.b16 %v789, %v785
  %v1106 = vpack.c.b16 %v790, %v786
  %v1107 = vpack.c.b16 %v791, %v787
  %v1108 = vpack.c.b16 %v796, %v792
  %v1109 = vpack.c.b16 %v797, %v793
  %v1110 = vpack.c.b16 %v798, %v794
  %v1111 = vpack.c.b16 %v799, %v795
  %v1112 = vpack.c.b16 %v804, %v800
  %v1113 = vpack.c.b16 %v805, %v801
  %v1114 = vpack.c.b16 %v806, %v802
  %v1115 = vpack.c.b16 %v807, %v803
  %v1116 = vpack.c.b16 %v812, %v808
  %v1117 = vpack.c.b16 %v813, %v809
  %v1118 = vpack.c.b16 %v814, %v810
  %v1119 = vpack.c.b16 %v815, %v811
  %v1120 = vpack.c.b16 %v820, %v816
  %v1121 = vpack.c.b16 %v821, %v817
  %v1122 = vpack.c.b16 %v822, %v818
  %v1123 = vpack.c.b16 %v823, %v819
  %v1124 = vpack.c.b16 %v828, %v824
  %v1125 = vpack.c.b16 %v829, %v825
  %v1126 = vpack.c.b16 %v830, %v826
  %v1127 = vpack.c.b16 %v831, %v827
  %v1128 = vpack.c.b16 %v836, %v832
  %v1129 = vpack.c.b16 %v837, %v833
  %v1130 = vpack.c.b16 %v838, %v834
  %v1131 = vpack.c.b16 %v839, %v835
  %v1132 = vpack.c.b16 %v844, %v840
  %v1133 = vpack.c.b16 %v845, %v841
  %v1134 = vpack.c.b16 %v846, %v842
  %v1135 = vpack.c.b16 %v847, %v843
  %v1136 = vpack.c.b16 %v852, %v848
  %v1137 = vpack.c.b16 %v853, %v849
  %v1138 = vpack.c.b16 %v854, %v850
  %v1139 = vpack.c.b16 %v855, %v851
  %v1140 = vpack.c.b16 %v860, %v856
  %v1141 = vpack.c.b16 %v861, %v857
  %v1142 = vpack.c.b16 %v862, %v858
  %v1143 = vpack.c.b16 %v863, %v859
  %v1144 = vpack.c.b16 %v868, %v864
  %v1145 = vpack.c.b16 %v869, %v865
  %v1146 = vpack.c.b16 %v870, %v866
  %v1147 = vpack.c.b16 %v871, %v867
  %v1148 = vpack.c.b16 %v876, %v872
  %v1149 = vpack.c.b16 %v877, %v873
  %v1150 = vpack.c.b16 %v878, %v874
  %v1151 = vpack.c.b16 %v879, %v875
  %v1152 = vpack.c.b16 %v884, %v880
  %v1153 = vpack.c.b16 %v885, %v881
  %v1154 = vpack.c.b16 %v886, %v882
  %v1155 = vpack.c.b16 %v887, %v883
  %v1156 = vpack.c.b16 %v892, %v888
  %v1157 = vpack.c.b16 %v893, %v889
  %v1158 = vpack.c.b16 %v894, %v890
  %v1159 = vpack.c.b16 %v895, %v891
  %v1160 = vpack.c.b16 %v900, %v896
  %v1161 = vpack.c.b16 %v901, %v897
  %v1162 = vpack.c.b16 %v902, %v898
  %v1163 = vpack.c.b16 %v903, %v899
  %v1164 = vpack.c.b16 %v908, %v904
  %v1165 = vpack.c.b16 %v909, %v905
  %v1166 = vpack.c.b16 %v910, %v906
  %v1167 = vpack.c.b16 %v911, %v907
  %v1168 = vpack.c.b16 %v916, %v912
  %v1169 = vpack.c.b16 %v917, %v913
  %v1170 = vpack.c.b16 %v918, %v914
  %v1171 = vpack.c.b16 %v919, %v915
  %v1172 = vpack.c.b16 %v924, %v920
  %v1173 = vpack.c.b16 %v925, %v921
  %v1174 = vpack.c.b16 %v926, %v922
  %v1175 = vpack.c.b16 %v927, %v923
  %v1176 = vpack.c.b16 %v932, %v928
  %v1177 = vpack.c.b16 %v933, %v929
  %v1178 = vpack.c.b16 %v934, %v930
  %v1179 = vpack.c.b16 %v935, %v931
  %v1180 = vpack.c.b16 %v940, %v936
  %v1181 = vpack.c.b16 %v941, %v937
  %v1182 = vpack.c.b16 %v942, %v938
  %v1183 = vpack.c.b16 %v943, %v939
  %v1184 = vpack.c.b16 %v948, %v944
  %v1185 = vpack.c.b16 %v949, %v945
  %v1186 = vpack.c.b16 %v950, %v946
  %v1187 = vpack.c.b16 %v951, %v947
  %v1188 = vpack.c.b16 %v956, %v952
  %v1189 = vpack.c.b16 %v957, %v953
  %v1190 = vpack.c.b16 %v958, %v954
  %v1191 = vpack.c.b16 %v959, %v955
  %v1192 = vpack.c.b16 %v964, %v960
  %v1193 = vpack.c.b16 %v965, %v961
  %v1194 = vpack.c.b16 %v966, %v962
  %v1195 = vpack.c.b16 %v967, %v963
  %v1196 = vpack.c.b16 %v972, %v968
  %v1197 = vpack.c.b16 %v973, %v969
  %v1198 = vpack.c.b16 %v974, %v970
  %v1199 = vpack.c.b16 %v975, %v971
  %1424 = vmatprep.subr.bf16.mxu0 %v977
  %1425 = vmatpush1.bf16.msra.mxu0 %v976
  %1426 = vmatprep.subr.bf16.mxu0 %v981
  %1427 = vmatpush1.bf16.msra.mxu0 %v980
  %1428 = vmatprep.subr.bf16.mxu0 %v985
  %1429 = vmatpush1.bf16.msra.mxu0 %v984
  %1430 = vmatprep.subr.bf16.mxu0 %v989
  %1431 = vmatpush1.bf16.msra.mxu0 %v988
  %1432 = vmatprep.subr.bf16.mxu0 %v993
  %1433 = vmatpush1.bf16.msra.mxu0 %v992
  %1434 = vmatprep.subr.bf16.mxu0 %v997
  %1435 = vmatpush1.bf16.msra.mxu0 %v996
  %1436 = vmatprep.subr.bf16.mxu0 %v1001
  %1437 = vmatpush1.bf16.msra.mxu0 %v1000
  %1438 = vmatprep.subr.bf16.mxu0 %v1005
  %1439 = vmatpush1.bf16.msra.mxu0 %v1004
  %1440 = vmatprep.subr.bf16.mxu0 %v1009
  %1441 = vmatpush1.bf16.msra.mxu0 %v1008
  %1442 = vmatprep.subr.bf16.mxu0 %v1013
  %1443 = vmatpush1.bf16.msra.mxu0 %v1012
  %1444 = vmatprep.subr.bf16.mxu0 %v1017
  %1445 = vmatpush1.bf16.msra.mxu0 %v1016
  %1446 = vmatprep.subr.bf16.mxu0 %v1021
  %1447 = vmatpush1.bf16.msra.mxu0 %v1020
  %1448 = vmatprep.subr.bf16.mxu0 %v1025
  %1449 = vmatpush1.bf16.msra.mxu0 %v1024
  %1450 = vmatprep.subr.bf16.mxu0 %v1029
  %1451 = vmatpush1.bf16.msra.mxu0 %v1028
  %1452 = vmatprep.subr.bf16.mxu0 %v1033
  %1453 = vmatpush1.bf16.msra.mxu0 %v1032
  %1454 = vmatprep.subr.bf16.mxu0 %v1037
  %1455 = vmatpush1.bf16.msra.mxu0 %v1036
  %1456 = vmatprep.mubr.bf16.mxu0 %v291
  %1457 = vmatmul.mubr.bf16.gmra.mrb[0].mxu0 %v290
  %v1458 = vpop.f32.mrb[0].mxu0
  %v1459 = vadd.f32 %v262, %v1458
  %v1460 = vpop.f32.mrb[0].mxu0
  %v1461 = vadd.f32 %v266, %v1460
  %v1462 = vpop.f32.mrb[0].mxu0
  %v1463 = vpop.f32.mrb[0].mxu0
  %1464 = vdwg.mxu0
  %1465 = vmatprep.subr.bf16.mxu0 %v1041
  %1466 = vmatpush1.bf16.msra.mxu0 %v1040
  %1467 = vmatprep.subr.bf16.mxu0 %v1045
  %1468 = vmatpush1.bf16.msra.mxu0 %v1044
  %1469 = vmatprep.subr.bf16.mxu0 %v1049
  %1470 = vmatpush1.bf16.msra.mxu0 %v1048
  %1471 = vmatprep.subr.bf16.mxu0 %v1053
  %1472 = vmatpush1.bf16.msra.mxu0 %v1052
  %1473 = vmatprep.subr.bf16.mxu0 %v1057
  %1474 = vmatpush1.bf16.msra.mxu0 %v1056
  %1475 = vmatprep.subr.bf16.mxu0 %v1061
  %1476 = vmatpush1.bf16.msra.mxu0 %v1060
  %1477 = vmatprep.subr.bf16.mxu0 %v1065
  %1478 = vmatpush1.bf16.msra.mxu0 %v1064
  %1479 = vmatprep.subr.bf16.mxu0 %v1069
  %1480 = vmatpush1.bf16.msra.mxu0 %v1068
  %1481 = vmatprep.subr.bf16.mxu0 %v1073
  %1482 = vmatpush1.bf16.msra.mxu0 %v1072
  %1483 = vmatprep.subr.bf16.mxu0 %v1077
  %1484 = vmatpush1.bf16.msra.mxu0 %v1076
  %1485 = vmatprep.subr.bf16.mxu0 %v1081
  %1486 = vmatpush1.bf16.msra.mxu0 %v1080
  %1487 = vmatprep.subr.bf16.mxu0 %v1085
  %1488 = vmatpush1.bf16.msra.mxu0 %v1084
  %1489 = vmatprep.subr.bf16.mxu0 %v1089
  %1490 = vmatpush1.bf16.msra.mxu0 %v1088
  %1491 = vmatprep.subr.bf16.mxu0 %v1093
  %1492 = vmatpush1.bf16.msra.mxu0 %v1092
  %1493 = vmatprep.subr.bf16.mxu0 %v1097
  %1494 = vmatpush1.bf16.msra.mxu0 %v1096
  %1495 = vmatprep.subr.bf16.mxu0 %v1101
  %1496 = vmatpush1.bf16.msra.mxu0 %v1100
  %1497 = vmatprep.mubr.bf16.mxu0 %v293
  %1498 = vmatmul.mubr.bf16.gmra.mrb[0].mxu0 %v292
  %v1499 = vpop.f32.mrb[0].mxu0
  %v1500 = vadd.f32 %v1459, %v1499
  %v1501 = vpop.f32.mrb[0].mxu0
  %v1502 = vadd.f32 %v1461, %v1501
  %v1503 = vpop.f32.mrb[0].mxu0
  %v1504 = vpop.f32.mrb[0].mxu0
  %1505 = vdwg.mxu0
  %1506 = vmatprep.subr.bf16.mxu0 %v1105
  %1507 = vmatpush1.bf16.msra.mxu0 %v1104
  %1508 = vmatprep.subr.bf16.mxu0 %v1109
  %1509 = vmatpush1.bf16.msra.mxu0 %v1108
  %1510 = vmatprep.subr.bf16.mxu0 %v1113
  %1511 = vmatpush1.bf16.msra.mxu0 %v1112
  %1512 = vmatprep.subr.bf16.mxu0 %v1117
  %1513 = vmatpush1.bf16.msra.mxu0 %v1116
  %1514 = vmatprep.subr.bf16.mxu0 %v1121
  %1515 = vmatpush1.bf16.msra.mxu0 %v1120
  %1516 = vmatprep.subr.bf16.mxu0 %v1125
  %1517 = vmatpush1.bf16.msra.mxu0 %v1124
  %1518 = vmatprep.subr.bf16.mxu0 %v1129
  %1519 = vmatpush1.bf16.msra.mxu0 %v1128
  %1520 = vmatprep.subr.bf16.mxu0 %v1133
  %1521 = vmatpush1.bf16.msra.mxu0 %v1132
  %1522 = vmatprep.subr.bf16.mxu0 %v1137
  %1523 = vmatpush1.bf16.msra.mxu0 %v1136
  %1524 = vmatprep.subr.bf16.mxu0 %v1141
  %1525 = vmatpush1.bf16.msra.mxu0 %v1140
  %1526 = vmatprep.subr.bf16.mxu0 %v1145
  %1527 = vmatpush1.bf16.msra.mxu0 %v1144
  %1528 = vmatprep.subr.bf16.mxu0 %v1149
  %1529 = vmatpush1.bf16.msra.mxu0 %v1148
  %1530 = vmatprep.subr.bf16.mxu0 %v1153
  %1531 = vmatpush1.bf16.msra.mxu0 %v1152
  %1532 = vmatprep.subr.bf16.mxu0 %v1157
  %1533 = vmatpush1.bf16.msra.mxu0 %v1156
  %1534 = vmatprep.subr.bf16.mxu0 %v1161
  %1535 = vmatpush1.bf16.msra.mxu0 %v1160
  %1536 = vmatprep.subr.bf16.mxu0 %v1165
  %1537 = vmatpush1.bf16.msra.mxu0 %v1164
  %1538 = vmatprep.mubr.bf16.mxu0 %v295
  %1539 = vmatmul.mubr.bf16.gmra.mrb[0].mxu0 %v294
  %v1540 = vpop.f32.mrb[0].mxu0
  %v1541 = vadd.f32 %v1500, %v1540
  %v1542 = vpop.f32.mrb[0].mxu0
  %v1543 = vadd.f32 %v1502, %v1542
  %v1544 = vpop.f32.mrb[0].mxu0
  %v1545 = vpop.f32.mrb[0].mxu0
  %1546 = vdwg.mxu0
  %1547 = vmatprep.subr.bf16.mxu0 %v1169
  %1548 = vmatpush1.bf16.msra.mxu0 %v1168
  %1549 = vmatprep.subr.bf16.mxu0 %v1173
  %1550 = vmatpush1.bf16.msra.mxu0 %v1172
  %1551 = vmatprep.subr.bf16.mxu0 %v1177
  %1552 = vmatpush1.bf16.msra.mxu0 %v1176
  %1553 = vmatprep.subr.bf16.mxu0 %v1181
  %1554 = vmatpush1.bf16.msra.mxu0 %v1180
  %1555 = vmatprep.subr.bf16.mxu0 %v1185
  %1556 = vmatpush1.bf16.msra.mxu0 %v1184
  %1557 = vmatprep.subr.bf16.mxu0 %v1189
  %1558 = vmatpush1.bf16.msra.mxu0 %v1188
  %1559 = vmatprep.subr.bf16.mxu0 %v1193
  %1560 = vmatpush1.bf16.msra.mxu0 %v1192
  %1561 = vmatprep.subr.bf16.mxu0 %v1197
  %1562 = vmatpush1.bf16.msra.mxu0 %v1196
  %1563 = vmatprep.subr.bf16.mxu0 0
  %1564 = vmatpush1.bf16.msra.mxu0 0
  %1565 = vmatprep.subr.bf16.mxu0 0
  %1566 = vmatpush1.bf16.msra.mxu0 0
  %1567 = vmatprep.subr.bf16.mxu0 0
  %1568 = vmatpush1.bf16.msra.mxu0 0
  %1569 = vmatprep.subr.bf16.mxu0 0
  %1570 = vmatpush1.bf16.msra.mxu0 0
  %1571 = vmatprep.subr.bf16.mxu0 0
  %1572 = vmatpush1.bf16.msra.mxu0 0
  %1573 = vmatprep.subr.bf16.mxu0 0
  %1574 = vmatpush1.bf16.msra.mxu0 0
  %1575 = vmatprep.subr.bf16.mxu0 0
  %1576 = vmatpush1.bf16.msra.mxu0 0
  %1577 = vmatprep.subr.bf16.mxu0 0
  %1578 = vmatpush1.bf16.msra.mxu0 0
  %1579 = vmatprep.mubr.bf16.mxu0 0
  %1580 = vmatmul.mubr.bf16.gmra.mrb[0].mxu0 %v296
  %v1581 = vpop.f32.mrb[0].mxu0
  %v1582 = vadd.f32 %v1541, %v1581
  %v1583 = vpop.f32.mrb[0].mxu0
  %v1584 = vadd.f32 %v1543, %v1583
  %v1585 = vpop.f32.mrb[0].mxu0
  %v1586 = vpop.f32.mrb[0].mxu0
  %1587 = vdwg.mxu0
  %1588 = vmatprep.subr.bf16.mxu0 %v979
  %1589 = vmatpush1.bf16.msra.mxu0 %v978
  %1590 = vmatprep.subr.bf16.mxu0 %v983
  %1591 = vmatpush1.bf16.msra.mxu0 %v982
  %1592 = vmatprep.subr.bf16.mxu0 %v987
  %1593 = vmatpush1.bf16.msra.mxu0 %v986
  %1594 = vmatprep.subr.bf16.mxu0 %v991
  %1595 = vmatpush1.bf16.msra.mxu0 %v990
  %1596 = vmatprep.subr.bf16.mxu0 %v995
  %1597 = vmatpush1.bf16.msra.mxu0 %v994
  %1598 = vmatprep.subr.bf16.mxu0 %v999
  %1599 = vmatpush1.bf16.msra.mxu0 %v998
  %1600 = vmatprep.subr.bf16.mxu0 %v1003
  %1601 = vmatpush1.bf16.msra.mxu0 %v1002
  %1602 = vmatprep.subr.bf16.mxu0 %v1007
  %1603 = vmatpush1.bf16.msra.mxu0 %v1006
  %1604 = vmatprep.subr.bf16.mxu0 %v1011
  %1605 = vmatpush1.bf16.msra.mxu0 %v1010
  %1606 = vmatprep.subr.bf16.mxu0 %v1015
  %1607 = vmatpush1.bf16.msra.mxu0 %v1014
  %1608 = vmatprep.subr.bf16.mxu0 %v1019
  %1609 = vmatpush1.bf16.msra.mxu0 %v1018
  %1610 = vmatprep.subr.bf16.mxu0 %v1023
  %1611 = vmatpush1.bf16.msra.mxu0 %v1022
  %1612 = vmatprep.subr.bf16.mxu0 %v1027
  %1613 = vmatpush1.bf16.msra.mxu0 %v1026
  %1614 = vmatprep.subr.bf16.mxu0 %v1031
  %1615 = vmatpush1.bf16.msra.mxu0 %v1030
  %1616 = vmatprep.subr.bf16.mxu0 %v1035
  %1617 = vmatpush1.bf16.msra.mxu0 %v1034
  %1618 = vmatprep.subr.bf16.mxu0 %v1039
  %1619 = vmatpush1.bf16.msra.mxu0 %v1038
  %1620 = vmatprep.mubr.bf16.mxu0 %v291
  %1621 = vmatmul.mubr.bf16.gmra.mrb[0].mxu0 %v290
  %v1622 = vpop.f32.mrb[0].mxu0
  %v1623 = vadd.f32 %v270, %v1622
  %v1624 = vpop.f32.mrb[0].mxu0
  %v1625 = vadd.f32 %v274, %v1624
  %v1626 = vpop.f32.mrb[0].mxu0
  %v1627 = vpop.f32.mrb[0].mxu0
  %1628 = vdwg.mxu0
  %1629 = vmatprep.subr.bf16.mxu0 %v1043
  %1630 = vmatpush1.bf16.msra.mxu0 %v1042
  %1631 = vmatprep.subr.bf16.mxu0 %v1047
  %1632 = vmatpush1.bf16.msra.mxu0 %v1046
  %1633 = vmatprep.subr.bf16.mxu0 %v1051
  %1634 = vmatpush1.bf16.msra.mxu0 %v1050
  %1635 = vmatprep.subr.bf16.mxu0 %v1055
  %1636 = vmatpush1.bf16.msra.mxu0 %v1054
  %1637 = vmatprep.subr.bf16.mxu0 %v1059
  %1638 = vmatpush1.bf16.msra.mxu0 %v1058
  %1639 = vmatprep.subr.bf16.mxu0 %v1063
  %1640 = vmatpush1.bf16.msra.mxu0 %v1062
  %1641 = vmatprep.subr.bf16.mxu0 %v1067
  %1642 = vmatpush1.bf16.msra.mxu0 %v1066
  %1643 = vmatprep.subr.bf16.mxu0 %v1071
  %1644 = vmatpush1.bf16.msra.mxu0 %v1070
  %1645 = vmatprep.subr.bf16.mxu0 %v1075
  %1646 = vmatpush1.bf16.msra.mxu0 %v1074
  %1647 = vmatprep.subr.bf16.mxu0 %v1079
  %1648 = vmatpush1.bf16.msra.mxu0 %v1078
  %1649 = vmatprep.subr.bf16.mxu0 %v1083
  %1650 = vmatpush1.bf16.msra.mxu0 %v1082
  %1651 = vmatprep.subr.bf16.mxu0 %v1087
  %1652 = vmatpush1.bf16.msra.mxu0 %v1086
  %1653 = vmatprep.subr.bf16.mxu0 %v1091
  %1654 = vmatpush1.bf16.msra.mxu0 %v1090
  %1655 = vmatprep.subr.bf16.mxu0 %v1095
  %1656 = vmatpush1.bf16.msra.mxu0 %v1094
  %1657 = vmatprep.subr.bf16.mxu0 %v1099
  %1658 = vmatpush1.bf16.msra.mxu0 %v1098
  %1659 = vmatprep.subr.bf16.mxu0 %v1103
  %1660 = vmatpush1.bf16.msra.mxu0 %v1102
  %1661 = vmatprep.mubr.bf16.mxu0 %v293
  %1662 = vmatmul.mubr.bf16.gmra.mrb[0].mxu0 %v292
  %v1663 = vpop.f32.mrb[0].mxu0
  %v1664 = vadd.f32 %v1623, %v1663
  %v1665 = vpop.f32.mrb[0].mxu0
  %v1666 = vadd.f32 %v1625, %v1665
  %v1667 = vpop.f32.mrb[0].mxu0
  %v1668 = vpop.f32.mrb[0].mxu0
  %1669 = vdwg.mxu0
  %1670 = vmatprep.subr.bf16.mxu0 %v1107
  %1671 = vmatpush1.bf16.msra.mxu0 %v1106
  %1672 = vmatprep.subr.bf16.mxu0 %v1111
  %1673 = vmatpush1.bf16.msra.mxu0 %v1110
  %1674 = vmatprep.subr.bf16.mxu0 %v1115
  %1675 = vmatpush1.bf16.msra.mxu0 %v1114
  %1676 = vmatprep.subr.bf16.mxu0 %v1119
  %1677 = vmatpush1.bf16.msra.mxu0 %v1118
  %1678 = vmatprep.subr.bf16.mxu0 %v1123
  %1679 = vmatpush1.bf16.msra.mxu0 %v1122
  %1680 = vmatprep.subr.bf16.mxu0 %v1127
  %1681 = vmatpush1.bf16.msra.mxu0 %v1126
  %1682 = vmatprep.subr.bf16.mxu0 %v1131
  %1683 = vmatpush1.bf16.msra.mxu0 %v1130
  %1684 = vmatprep.subr.bf16.mxu0 %v1135
  %1685 = vmatpush1.bf16.msra.mxu0 %v1134
  %1686 = vmatprep.subr.bf16.mxu0 %v1139
  %1687 = vmatpush1.bf16.msra.mxu0 %v1138
  %1688 = vmatprep.subr.bf16.mxu0 %v1143
  %1689 = vmatpush1.bf16.msra.mxu0 %v1142
  %1690 = vmatprep.subr.bf16.mxu0 %v1147
  %1691 = vmatpush1.bf16.msra.mxu0 %v1146
  %1692 = vmatprep.subr.bf16.mxu0 %v1151
  %1693 = vmatpush1.bf16.msra.mxu0 %v1150
  %1694 = vmatprep.subr.bf16.mxu0 %v1155
  %1695 = vmatpush1.bf16.msra.mxu0 %v1154
  %1696 = vmatprep.subr.bf16.mxu0 %v1159
  %1697 = vmatpush1.bf16.msra.mxu0 %v1158
  %1698 = vmatprep.subr.bf16.mxu0 %v1163
  %1699 = vmatpush1.bf16.msra.mxu0 %v1162
  %1700 = vmatprep.subr.bf16.mxu0 %v1167
  %1701 = vmatpush1.bf16.msra.mxu0 %v1166
  %1702 = vmatprep.mubr.bf16.mxu0 %v295
  %1703 = vmatmul.mubr.bf16.gmra.mrb[0].mxu0 %v294
  %v1704 = vpop.f32.mrb[0].mxu0
  %v1705 = vadd.f32 %v1664, %v1704
  %v1706 = vpop.f32.mrb[0].mxu0
  %v1707 = vadd.f32 %v1666, %v1706
  %v1708 = vpop.f32.mrb[0].mxu0
  %v1709 = vpop.f32.mrb[0].mxu0
  %1710 = vdwg.mxu0
  %1711 = vmatprep.subr.bf16.mxu0 %v1171
  %1712 = vmatpush1.bf16.msra.mxu0 %v1170
  %1713 = vmatprep.subr.bf16.mxu0 %v1175
  %1714 = vmatpush1.bf16.msra.mxu0 %v1174
  %1715 = vmatprep.subr.bf16.mxu0 %v1179
  %1716 = vmatpush1.bf16.msra.mxu0 %v1178
  %1717 = vmatprep.subr.bf16.mxu0 %v1183
  %1718 = vmatpush1.bf16.msra.mxu0 %v1182
  %1719 = vmatprep.subr.bf16.mxu0 %v1187
  %1720 = vmatpush1.bf16.msra.mxu0 %v1186
  %1721 = vmatprep.subr.bf16.mxu0 %v1191
  %1722 = vmatpush1.bf16.msra.mxu0 %v1190
  %1723 = vmatprep.subr.bf16.mxu0 %v1195
  %1724 = vmatpush1.bf16.msra.mxu0 %v1194
  %1725 = vmatprep.subr.bf16.mxu0 %v1199
  %1726 = vmatpush1.bf16.msra.mxu0 %v1198
  %1727 = vmatprep.subr.bf16.mxu0 0
  %1728 = vmatpush1.bf16.msra.mxu0 0
  %1729 = vmatprep.subr.bf16.mxu0 0
  %1730 = vmatpush1.bf16.msra.mxu0 0
  %1731 = vmatprep.subr.bf16.mxu0 0
  %1732 = vmatpush1.bf16.msra.mxu0 0
  %1733 = vmatprep.subr.bf16.mxu0 0
  %1734 = vmatpush1.bf16.msra.mxu0 0
  %1735 = vmatprep.subr.bf16.mxu0 0
  %1736 = vmatpush1.bf16.msra.mxu0 0
  %1737 = vmatprep.subr.bf16.mxu0 0
  %1738 = vmatpush1.bf16.msra.mxu0 0
  %1739 = vmatprep.subr.bf16.mxu0 0
  %1740 = vmatpush1.bf16.msra.mxu0 0
  %1741 = vmatprep.subr.bf16.mxu0 0
  %1742 = vmatpush1.bf16.msra.mxu0 0
  %1743 = vmatprep.mubr.bf16.mxu0 0
  %1744 = vmatmul.mubr.bf16.gmra.mrb[0].mxu0 %v296
  %v1745 = vpop.f32.mrb[0].mxu0
  %v1746 = vadd.f32 %v1705, %v1745
  %v1747 = vpop.f32.mrb[0].mxu0
  %v1748 = vadd.f32 %v1707, %v1747
  %v1749 = vpop.f32.mrb[0].mxu0
  %v1750 = vpop.f32.mrb[0].mxu0
  %1751 = vdwg.mxu0
  %vm1752 = vcmp.gt.f32.partialorder %v1582, 0.0
  %vm1753 = vcmp.gt.f32.partialorder %v1584, 0.0
  %vm1754 = vcmp.gt.f32.partialorder %v1746, 0.0
  %vm1755 = vcmp.gt.f32.partialorder %v1748, 0.0
  %v1756 = vmul.f32 %v1582, 0.2
  %v1757 = vmul.f32 %v1584, 0.2
  %v1758 = vmul.f32 %v1746, 0.2
  %v1759 = vmul.f32 %v1748, 0.2
  %v1760 = vsel %vm1752, %v1582, %v1756
  %v1761 = vsel %vm1753, %v1584, %v1757
  %v1762 = vsel %vm1754, %v1746, %v1758
  %v1763 = vsel %vm1755, %v1748, %v1759
  %v1764 = vpack.c.bf16 %v1760, %v1760
  %v1765 = vpack.c.bf16 %v1761, %v1761
  %v1766 = vpack.c.bf16 %v1762, %v1762
  %v1767 = vpack.c.bf16 %v1763, %v1763
  %v1768 = vld [vmem:[%s3] sm:$0xff]
  %v1769 = vld [vmem:[%s3 + $0x8] sm:$0xff]
  %v1770 = vld [vmem:[%s3 + $0x10] sm:$0xff]
  %v1771 = vld [vmem:[%s3 + $0x18] sm:$0xff]
  %v1772 = vld [vmem:[%s3 + $0x20] sm:$0xff]
  %v1773 = vld [vmem:[%s3 + $0x28] sm:$0xff]
  %v1774 = vld [vmem:[%s3 + $0x30] sm:$0xff]
  %v1775 = vld [vmem:[%s3 + $0x38] sm:$0xff]
  %v1776 = vld [vmem:[%s3 + $0x40] sm:$0xff]
  %v1777 = vld [vmem:[%s3 + $0x48] sm:$0xff]
  %v1778 = vld [vmem:[%s3 + $0x50] sm:$0xff]
  %v1779 = vld [vmem:[%s3 + $0x58] sm:$0xff]
  %v1780 = vld [vmem:[%s3 + $0x60] sm:$0xff]
  %v1781 = vld [vmem:[%s3 + $0x68] sm:$0xff]
  %v1782 = vld [vmem:[%s3 + $0x70] sm:$0xff]
  %v1783 = vld [vmem:[%s3 + $0x78] sm:$0xff]
  %v1784 = vld [vmem:[%s3 + $0x80] sm:$0xff]
  %v1785 = vld [vmem:[%s3 + $0x88] sm:$0xff]
  %v1786 = vld [vmem:[%s3 + $0x90] sm:$0xff]
  %v1787 = vld [vmem:[%s3 + $0x98] sm:$0xff]
  %v1788 = vld [vmem:[%s3 + $0xa0] sm:$0xff]
  %v1789 = vld [vmem:[%s3 + $0xa8] sm:$0xff]
  %v1790 = vld [vmem:[%s3 + $0xb0] sm:$0xff]
  %v1791 = vld [vmem:[%s3 + $0xb8] sm:$0xff]
  %v1792 = vld [vmem:[%s3 + $0xc0] sm:$0xff]
  %v1793 = vld [vmem:[%s3 + $0xc8] sm:$0xff]
  %v1794 = vld [vmem:[%s3 + $0xd0] sm:$0xff]
  %v1795 = vld [vmem:[%s3 + $0xd8] sm:$0xff]
  %v1796 = vld [vmem:[%s3 + $0xe0] sm:$0xff]
  %v1797 = vld [vmem:[%s3 + $0xe8] sm:$0xff]
  %v1798 = vld [vmem:[%s3 + $0xf0] sm:$0xff]
  %v1799 = vld [vmem:[%s3 + $0xf8] sm:$0xff]
  %v1800 = vld [vmem:[%s3 + $0x100] sm:$0xff]
  %v1801 = vld [vmem:[%s3 + $0x108] sm:$0xff]
  %v1802 = vld [vmem:[%s3 + $0x110] sm:$0xff]
  %v1803 = vld [vmem:[%s3 + $0x118] sm:$0xff]
  %v1804 = vld [vmem:[%s3 + $0x120] sm:$0xff]
  %v1805 = vld [vmem:[%s3 + $0x128] sm:$0xff]
  %v1806 = vld [vmem:[%s3 + $0x130] sm:$0xff]
  %v1807 = vld [vmem:[%s3 + $0x138] sm:$0xff]
  %v1808 = vld [vmem:[%s3 + $0x140] sm:$0xff]
  %v1809 = vld [vmem:[%s3 + $0x148] sm:$0xff]
  %v1810 = vld [vmem:[%s3 + $0x150] sm:$0xff]
  %v1811 = vld [vmem:[%s3 + $0x158] sm:$0xff]
  %v1812 = vld [vmem:[%s3 + $0x160] sm:$0xff]
  %v1813 = vld [vmem:[%s3 + $0x168] sm:$0xff]
  %v1814 = vld [vmem:[%s3 + $0x170] sm:$0xff]
  %v1815 = vld [vmem:[%s3 + $0x178] sm:$0xff]
  %v1816 = vld [vmem:[%s3 + $0x180] sm:$0xff]
  %v1817 = vld [vmem:[%s3 + $0x188] sm:$0xff]
  %v1818 = vld [vmem:[%s3 + $0x190] sm:$0xff]
  %v1819 = vld [vmem:[%s3 + $0x198] sm:$0xff]
  %v1820 = vld [vmem:[%s3 + $0x1a0] sm:$0xff]
  %v1821 = vld [vmem:[%s3 + $0x1a8] sm:$0xff]
  %v1822 = vld [vmem:[%s3 + $0x1b0] sm:$0xff]
  %v1823 = vld [vmem:[%s3 + $0x1b8] sm:$0xff]
  %v1824 = vld [vmem:[%s3 + $0x1c0] sm:$0xff]
  %v1825 = vld [vmem:[%s3 + $0x1c8] sm:$0xff]
  %v1826 = vld [vmem:[%s3 + $0x1d0] sm:$0xff]
  %v1827 = vld [vmem:[%s3 + $0x1d8] sm:$0xff]
  %v1828 = vld [vmem:[%s3 + $0x1e0] sm:$0xff]
  %v1829 = vld [vmem:[%s3 + $0x1e8] sm:$0xff]
  %v1830 = vld [vmem:[%s3 + $0x1f0] sm:$0xff]
  %v1831 = vld [vmem:[%s3 + $0x1f8] sm:$0xff]
  %v1832 = vld [vmem:[%s4] sm:$0x3]
  %v1834 = vlaneseq
  %v1835 = vshrl.u32 %v1834, 7
  %v1836 = vsub.s32 0, %v1835
  %v1837 = vrot.slane %v1832, %v1836
  %v1838 = vlaneseq
  %v1839 = vshrl.u32 %v1838, 7
  %v1840 = vsub.s32 1, %v1839
  %v1841 = vrot.slane %v1832, %v1840
  %v1908 = vunpack.c.l.b16 %v1768
  %v1909 = vunpack.c.h.b16 %v1768
  %v1910 = vunpack.c.l.b16 %v1769
  %v1911 = vunpack.c.h.b16 %v1769
  %v1912 = vunpack.c.l.b16 %v1770
  %v1913 = vunpack.c.h.b16 %v1770
  %v1914 = vunpack.c.l.b16 %v1771
  %v1915 = vunpack.c.h.b16 %v1771
  %v1916 = vunpack.c.l.b16 %v1772
  %v1917 = vunpack.c.h.b16 %v1772
  %v1918 = vunpack.c.l.b16 %v1773
  %v1919 = vunpack.c.h.b16 %v1773
  %v1920 = vunpack.c.l.b16 %v1774
  %v1921 = vunpack.c.h.b16 %v1774
  %v1922 = vunpack.c.l.b16 %v1775
  %v1923 = vunpack.c.h.b16 %v1775
  %v1924 = vunpack.c.l.b16 %v1776
  %v1925 = vunpack.c.h.b16 %v1776
  %v1926 = vunpack.c.l.b16 %v1777
  %v1927 = vunpack.c.h.b16 %v1777
  %v1928 = vunpack.c.l.b16 %v1778
  %v1929 = vunpack.c.h.b16 %v1778
  %v1930 = vunpack.c.l.b16 %v1779
  %v1931 = vunpack.c.h.b16 %v1779
  %v1932 = vunpack.c.l.b16 %v1780
  %v1933 = vunpack.c.h.b16 %v1780
  %v1934 = vunpack.c.l.b16 %v1781
  %v1935 = vunpack.c.h.b16 %v1781
  %v1936 = vunpack.c.l.b16 %v1782
  %v1937 = vunpack.c.h.b16 %v1782
  %v1938 = vunpack.c.l.b16 %v1783
  %v1939 = vunpack.c.h.b16 %v1783
  %v1940 = vunpack.c.l.b16 %v1784
  %v1941 = vunpack.c.h.b16 %v1784
  %v1942 = vunpack.c.l.b16 %v1785
  %v1943 = vunpack.c.h.b16 %v1785
  %v1944 = vunpack.c.l.b16 %v1786
  %v1945 = vunpack.c.h.b16 %v1786
  %v1946 = vunpack.c.l.b16 %v1787
  %v1947 = vunpack.c.h.b16 %v1787
  %v1948 = vunpack.c.l.b16 %v1788
  %v1949 = vunpack.c.h.b16 %v1788
  %v1950 = vunpack.c.l.b16 %v1789
  %v1951 = vunpack.c.h.b16 %v1789
  %v1952 = vunpack.c.l.b16 %v1790
  %v1953 = vunpack.c.h.b16 %v1790
  %v1954 = vunpack.c.l.b16 %v1791
  %v1955 = vunpack.c.h.b16 %v1791
  %v1956 = vunpack.c.l.b16 %v1792
  %v1957 = vunpack.c.h.b16 %v1792
  %v1958 = vunpack.c.l.b16 %v1793
  %v1959 = vunpack.c.h.b16 %v1793
  %v1960 = vunpack.c.l.b16 %v1794
  %v1961 = vunpack.c.h.b16 %v1794
  %v1962 = vunpack.c.l.b16 %v1795
  %v1963 = vunpack.c.h.b16 %v1795
  %v1964 = vunpack.c.l.b16 %v1796
  %v1965 = vunpack.c.h.b16 %v1796
  %v1966 = vunpack.c.l.b16 %v1797
  %v1967 = vunpack.c.h.b16 %v1797
  %v1968 = vunpack.c.l.b16 %v1798
  %v1969 = vunpack.c.h.b16 %v1798
  %v1970 = vunpack.c.l.b16 %v1799
  %v1971 = vunpack.c.h.b16 %v1799
  %v1972 = vunpack.c.l.b16 %v1800
  %v1973 = vunpack.c.h.b16 %v1800
  %v1974 = vunpack.c.l.b16 %v1801
  %v1975 = vunpack.c.h.b16 %v1801
  %v1976 = vunpack.c.l.b16 %v1802
  %v1977 = vunpack.c.h.b16 %v1802
  %v1978 = vunpack.c.l.b16 %v1803
  %v1979 = vunpack.c.h.b16 %v1803
  %v1980 = vunpack.c.l.b16 %v1804
  %v1981 = vunpack.c.h.b16 %v1804
  %v1982 = vunpack.c.l.b16 %v1805
  %v1983 = vunpack.c.h.b16 %v1805
  %v1984 = vunpack.c.l.b16 %v1806
  %v1985 = vunpack.c.h.b16 %v1806
  %v1986 = vunpack.c.l.b16 %v1807
  %v1987 = vunpack.c.h.b16 %v1807
  %v1988 = vunpack.c.l.b16 %v1808
  %v1989 = vunpack.c.h.b16 %v1808
  %v1990 = vunpack.c.l.b16 %v1809
  %v1991 = vunpack.c.h.b16 %v1809
  %v1992 = vunpack.c.l.b16 %v1810
  %v1993 = vunpack.c.h.b16 %v1810
  %v1994 = vunpack.c.l.b16 %v1811
  %v1995 = vunpack.c.h.b16 %v1811
  %v1996 = vunpack.c.l.b16 %v1812
  %v1997 = vunpack.c.h.b16 %v1812
  %v1998 = vunpack.c.l.b16 %v1813
  %v1999 = vunpack.c.h.b16 %v1813
  %v2000 = vunpack.c.l.b16 %v1814
  %v2001 = vunpack.c.h.b16 %v1814
  %v2002 = vunpack.c.l.b16 %v1815
  %v2003 = vunpack.c.h.b16 %v1815
  %v2004 = vunpack.c.l.b16 %v1816
  %v2005 = vunpack.c.h.b16 %v1816
  %v2006 = vunpack.c.l.b16 %v1817
  %v2007 = vunpack.c.h.b16 %v1817
  %v2008 = vunpack.c.l.b16 %v1818
  %v2009 = vunpack.c.h.b16 %v1818
  %v2010 = vunpack.c.l.b16 %v1819
  %v2011 = vunpack.c.h.b16 %v1819
  %v2012 = vunpack.c.l.b16 %v1820
  %v2013 = vunpack.c.h.b16 %v1820
  %v2014 = vunpack.c.l.b16 %v1821
  %v2015 = vunpack.c.h.b16 %v1821
  %v2016 = vunpack.c.l.b16 %v1822
  %v2017 = vunpack.c.h.b16 %v1822
  %v2018 = vunpack.c.l.b16 %v1823
  %v2019 = vunpack.c.h.b16 %v1823
  %v2020 = vunpack.c.l.b16 %v1824
  %v2021 = vunpack.c.h.b16 %v1824
  %v2022 = vunpack.c.l.b16 %v1825
  %v2023 = vunpack.c.h.b16 %v1825
  %v2024 = vunpack.c.l.b16 %v1826
  %v2025 = vunpack.c.h.b16 %v1826
  %v2026 = vunpack.c.l.b16 %v1827
  %v2027 = vunpack.c.h.b16 %v1827
  %v2028 = vunpack.c.l.b16 %v1828
  %v2029 = vunpack.c.h.b16 %v1828
  %v2030 = vunpack.c.l.b16 %v1829
  %v2031 = vunpack.c.h.b16 %v1829
  %v2032 = vunpack.c.l.b16 %v1830
  %v2033 = vunpack.c.h.b16 %v1830
  %v2034 = vunpack.c.l.b16 %v1831
  %v2035 = vunpack.c.h.b16 %v1831
  %v2036 = vpack.c.b16 %v1910, %v1908
  %v2037 = vpack.c.b16 %v1911, %v1909
  %v2038 = vpack.c.b16 %v1914, %v1912
  %v2039 = vpack.c.b16 %v1915, %v1913
  %v2040 = vpack.c.b16 %v1918, %v1916
  %v2041 = vpack.c.b16 %v1919, %v1917
  %v2042 = vpack.c.b16 %v1922, %v1920
  %v2043 = vpack.c.b16 %v1923, %v1921
  %v2044 = vpack.c.b16 %v1926, %v1924
  %v2045 = vpack.c.b16 %v1927, %v1925
  %v2046 = vpack.c.b16 %v1930, %v1928
  %v2047 = vpack.c.b16 %v1931, %v1929
  %v2048 = vpack.c.b16 %v1934, %v1932
  %v2049 = vpack.c.b16 %v1935, %v1933
  %v2050 = vpack.c.b16 %v1938, %v1936
  %v2051 = vpack.c.b16 %v1939, %v1937
  %v2052 = vpack.c.b16 %v1942, %v1940
  %v2053 = vpack.c.b16 %v1943, %v1941
  %v2054 = vpack.c.b16 %v1946, %v1944
  %v2055 = vpack.c.b16 %v1947, %v1945
  %v2056 = vpack.c.b16 %v1950, %v1948
  %v2057 = vpack.c.b16 %v1951, %v1949
  %v2058 = vpack.c.b16 %v1954, %v1952
  %v2059 = vpack.c.b16 %v1955, %v1953
  %v2060 = vpack.c.b16 %v1958, %v1956
  %v2061 = vpack.c.b16 %v1959, %v1957
  %v2062 = vpack.c.b16 %v1962, %v1960
  %v2063 = vpack.c.b16 %v1963, %v1961
  %v2064 = vpack.c.b16 %v1966, %v1964
  %v2065 = vpack.c.b16 %v1967, %v1965
  %v2066 = vpack.c.b16 %v1970, %v1968
  %v2067 = vpack.c.b16 %v1971, %v1969
  %v2068 = vpack.c.b16 %v1974, %v1972
  %v2069 = vpack.c.b16 %v1975, %v1973
  %v2070 = vpack.c.b16 %v1978, %v1976
  %v2071 = vpack.c.b16 %v1979, %v1977
  %v2072 = vpack.c.b16 %v1982, %v1980
  %v2073 = vpack.c.b16 %v1983, %v1981
  %v2074 = vpack.c.b16 %v1986, %v1984
  %v2075 = vpack.c.b16 %v1987, %v1985
  %v2076 = vpack.c.b16 %v1990, %v1988
  %v2077 = vpack.c.b16 %v1991, %v1989
  %v2078 = vpack.c.b16 %v1994, %v1992
  %v2079 = vpack.c.b16 %v1995, %v1993
  %v2080 = vpack.c.b16 %v1998, %v1996
  %v2081 = vpack.c.b16 %v1999, %v1997
  %v2082 = vpack.c.b16 %v2002, %v2000
  %v2083 = vpack.c.b16 %v2003, %v2001
  %v2084 = vpack.c.b16 %v2006, %v2004
  %v2085 = vpack.c.b16 %v2007, %v2005
  %v2086 = vpack.c.b16 %v2010, %v2008
  %v2087 = vpack.c.b16 %v2011, %v2009
  %v2088 = vpack.c.b16 %v2014, %v2012
  %v2089 = vpack.c.b16 %v2015, %v2013
  %v2090 = vpack.c.b16 %v2018, %v2016
  %v2091 = vpack.c.b16 %v2019, %v2017
  %v2092 = vpack.c.b16 %v2022, %v2020
  %v2093 = vpack.c.b16 %v2023, %v2021
  %v2094 = vpack.c.b16 %v2026, %v2024
  %v2095 = vpack.c.b16 %v2027, %v2025
  %v2096 = vpack.c.b16 %v2030, %v2028
  %v2097 = vpack.c.b16 %v2031, %v2029
  %v2098 = vpack.c.b16 %v2034, %v2032
  %v2099 = vpack.c.b16 %v2035, %v2033
  %2164 = vmatprep.subr.bf16.mxu0 %v2037
  %2165 = vmatpush1.bf16.msra.mxu0 %v2036
  %2166 = vmatprep.subr.bf16.mxu0 %v2039
  %2167 = vmatpush1.bf16.msra.mxu0 %v2038
  %2168 = vmatprep.subr.bf16.mxu0 %v2041
  %2169 = vmatpush1.bf16.msra.mxu0 %v2040
  %2170 = vmatprep.subr.bf16.mxu0 %v2043
  %2171 = vmatpush1.bf16.msra.mxu0 %v2042
  %2172 = vmatprep.subr.bf16.mxu0 %v2045
  %2173 = vmatpush1.bf16.msra.mxu0 %v2044
  %2174 = vmatprep.subr.bf16.mxu0 %v2047
  %2175 = vmatpush1.bf16.msra.mxu0 %v2046
  %2176 = vmatprep.subr.bf16.mxu0 %v2049
  %2177 = vmatpush1.bf16.msra.mxu0 %v2048
  %2178 = vmatprep.subr.bf16.mxu0 %v2051
  %2179 = vmatpush1.bf16.msra.mxu0 %v2050
  %2180 = vmatprep.subr.bf16.mxu0 %v2053
  %2181 = vmatpush1.bf16.msra.mxu0 %v2052
  %2182 = vmatprep.subr.bf16.mxu0 %v2055
  %2183 = vmatpush1.bf16.msra.mxu0 %v2054
  %2184 = vmatprep.subr.bf16.mxu0 %v2057
  %2185 = vmatpush1.bf16.msra.mxu0 %v2056
  %2186 = vmatprep.subr.bf16.mxu0 %v2059
  %2187 = vmatpush1.bf16.msra.mxu0 %v2058
  %2188 = vmatprep.subr.bf16.mxu0 %v2061
  %2189 = vmatpush1.bf16.msra.mxu0 %v2060
  %2190 = vmatprep.subr.bf16.mxu0 %v2063
  %2191 = vmatpush1.bf16.msra.mxu0 %v2062
  %2192 = vmatprep.subr.bf16.mxu0 %v2065
  %2193 = vmatpush1.bf16.msra.mxu0 %v2064
  %2194 = vmatprep.subr.bf16.mxu0 %v2067
  %2195 = vmatpush1.bf16.msra.mxu0 %v2066
  %2196 = vmatprep.mubr.bf16.mxu0 %v1765
  %2197 = vmatmul.mubr.bf16.gmra.mrb[0].mxu0 %v1764
  %v2198 = vpop.f32.mrb[0].mxu0
  %v2199 = vadd.f32 %v1837, %v2198
  %v2200 = vpop.f32.mrb[0].mxu0
  %v2201 = vadd.f32 %v1841, %v2200
  %v2202 = vpop.f32.mrb[0].mxu0
  %v2203 = vpop.f32.mrb[0].mxu0
  %2204 = vdwg.mxu0
  %2205 = vmatprep.subr.bf16.mxu0 %v2069
  %2206 = vmatpush1.bf16.msra.mxu0 %v2068
  %2207 = vmatprep.subr.bf16.mxu0 %v2071
  %2208 = vmatpush1.bf16.msra.mxu0 %v2070
  %2209 = vmatprep.subr.bf16.mxu0 %v2073
  %2210 = vmatpush1.bf16.msra.mxu0 %v2072
  %2211 = vmatprep.subr.bf16.mxu0 %v2075
  %2212 = vmatpush1.bf16.msra.mxu0 %v2074
  %2213 = vmatprep.subr.bf16.mxu0 %v2077
  %2214 = vmatpush1.bf16.msra.mxu0 %v2076
  %2215 = vmatprep.subr.bf16.mxu0 %v2079
  %2216 = vmatpush1.bf16.msra.mxu0 %v2078
  %2217 = vmatprep.subr.bf16.mxu0 %v2081
  %2218 = vmatpush1.bf16.msra.mxu0 %v2080
  %2219 = vmatprep.subr.bf16.mxu0 %v2083
  %2220 = vmatpush1.bf16.msra.mxu0 %v2082
  %2221 = vmatprep.subr.bf16.mxu0 %v2085
  %2222 = vmatpush1.bf16.msra.mxu0 %v2084
  %2223 = vmatprep.subr.bf16.mxu0 %v2087
  %2224 = vmatpush1.bf16.msra.mxu0 %v2086
  %2225 = vmatprep.subr.bf16.mxu0 %v2089
  %2226 = vmatpush1.bf16.msra.mxu0 %v2088
  %2227 = vmatprep.subr.bf16.mxu0 %v2091
  %2228 = vmatpush1.bf16.msra.mxu0 %v2090
  %2229 = vmatprep.subr.bf16.mxu0 %v2093
  %2230 = vmatpush1.bf16.msra.mxu0 %v2092
  %2231 = vmatprep.subr.bf16.mxu0 %v2095
  %2232 = vmatpush1.bf16.msra.mxu0 %v2094
  %2233 = vmatprep.subr.bf16.mxu0 %v2097
  %2234 = vmatpush1.bf16.msra.mxu0 %v2096
  %2235 = vmatprep.subr.bf16.mxu0 %v2099
  %2236 = vmatpush1.bf16.msra.mxu0 %v2098
  %2237 = vmatprep.mubr.bf16.mxu0 %v1767
  %2238 = vmatmul.mubr.bf16.gmra.mrb[0].mxu0 %v1766
  %v2239 = vpop.f32.mrb[0].mxu0
  %v2240 = vadd.f32 %v2199, %v2239
  %v2241 = vpop.f32.mrb[0].mxu0
  %v2242 = vadd.f32 %v2201, %v2241
  %v2243 = vpop.f32.mrb[0].mxu0
  %v2244 = vpop.f32.mrb[0].mxu0
  %2245 = vdwg.mxu0
  %vm2246 = vcmp.gt.f32.partialorder %v2240, 0.0
  %vm2247 = vcmp.gt.f32.partialorder %v2242, 0.0
  %v2248 = vmul.f32 %v2240, 0.2
  %v2249 = vmul.f32 %v2242, 0.2
  %v2250 = vsel %vm2246, %v2240, %v2248
  %v2251 = vsel %vm2247, %v2242, %v2249
  %v2252 = vld [vmem:[%s5] sm:$0x3]
  %v2254 = vlaneseq
  %v2255 = vshrl.u32 %v2254, 7
  %v2256 = vsub.s32 0, %v2255
  %v2257 = vrot.slane %v2252, %v2256
  %v2258 = vlaneseq
  %v2259 = vshrl.u32 %v2258, 7
  %v2260 = vsub.s32 1, %v2259
  %v2261 = vrot.slane %v2252, %v2260
  %v2264 = vmul.f32 %v2250, %v2257
  %v2265 = vmul.f32 %v2251, %v2261
  %v2266 = vadd.f32 %v2264, %v2265
  %2267 = vadd.xlane.f32.xlu0 %v2266
  %v2268 = vpop.xlane.xlu0 %2267
  %v2269 = vld [vmem:[#allocation2] sm:$0x1]
  %v2271 = vlaneseq
  %v2272 = vshrl.u32 %v2271, 7
  %v2273 = vsub.s32 0, %v2272
  %v2274 = vrot.slane %v2269, %v2273
  %v2276 = vadd.f32 %v2268, %v2274
  %vm2277 = vcmask 7168
  %2278 = vst.msk [vmem:[%s7] sm:$0xff] %vm2277, %v2276
  // Predicated region
  $region30: #{discriminator_forward.1} parent=0 // pred_check
    _
  $region31: #{discriminator_forward.1} parent=0 // pred_check_branch
    %2280 = sbr.rel (0) target = $region33
  $region32: #{discriminator_forward.1} parent=0 // pred_region
    _
  $region33: #{discriminator_forward.1} parent=0 // pred_fallthru
    _
  // Predicated region
  $region34: #{discriminator_forward.1} parent=0 // pred_check
    _
  $region35: #{discriminator_forward.1} parent=0 // pred_check_branch
    %2282 = sbr.rel (0) target = $region37
  $region36: #{discriminator_forward.1} parent=0 // pred_region
    _
  $region37: #{discriminator_forward.1} parent=0 // pred_fallthru
    _

</llo_original>
